<compile_context>
chip_gen: v5e
topology: v5e:2x2
jax: 0.10.0
libtpu: 0.0.40
codegen_flags: <defaults>
</compile_context>

<pallas_src>
import functools

import jax
import jax.numpy as jnp
import numpy as np
from jax.experimental import pallas as pl
from jax.experimental.pallas import tpu as pltpu

_MIB = 1024 * 1024


def _round_up(x, m):
    return (x + m - 1) // m * m


def _vmem_capacity_bytes():
    """Trace-time VMEM capacity query with a conservative fallback (v7x per-TC)."""
    try:
        info = pltpu.get_tpu_info()
        for attr in ("vmem_capacity_bytes", "vmem_bytes", "vmem_size_bytes"):
            v = getattr(info, attr, None)
            if v:
                return int(v)
    except Exception:
        pass
    return 64 * _MIB


# ----------------------------------------------------------------------------- glue
def rot_vec_to_mat(r):
    """Rodrigues: axis-angle vectors (B, 3) -> rotation matrices (B, 3, 3)."""
    theta = jnp.sqrt(jnp.sum(r * r, axis=-1, keepdims=True))          # (B, 1)
    theta_safe = jnp.maximum(theta, 1e-8)
    k = r / theta_safe                                                 # (B, 3)
    kx, ky, kz = k[:, 0], k[:, 1], k[:, 2]
    z = jnp.zeros_like(kx)
    K = jnp.stack([jnp.stack([z, -kz, ky], -1),
                   jnp.stack([kz, z, -kx], -1),
                   jnp.stack([-ky, kx, z], -1)], -2)                   # (B, 3, 3)
    I = jnp.eye(3, dtype=r.dtype)[None]
    st = jnp.sin(theta)[:, :, None]
    ct = jnp.cos(theta)[:, :, None]
    return I + st * K + (1.0 - ct) * (K @ K)


# ----------------------------------------------------------------------------- kernel
def _loss_kernel(n_vert, n_rows, ragged,
                 f_inp_ref, f_rend_ref, mask_ref, verts_ref,
                 rm_gt_ref, t_gt_ref, rm_ini_ref, t_ini_ref, rm_ref, t_ref,
                 out_ref, dsum_ref, msum_ref):
    b = pl.program_id(0)          # batch element          ("parallel")
    s = pl.program_id(1)          # spatial row-tile index ("arbitrary" reduction)
    ns = pl.num_programs(1)

    # ---- init vreg-shaped accumulators at the first spatial tile ----
    @pl.when(s == 0)
    def _():
        dsum_ref[...] = jnp.zeros_like(dsum_ref)
        msum_ref[...] = jnp.zeros_like(msum_ref)

    rows_tile = mask_ref.shape[2]                                 # static

    # ---- masked feature diff partial sums ----
    m0 = mask_ref[0, 0].astype(jnp.float32)                       # (rows_tile, 128)
    if ragged:
        # last tile may extend past the real rows -> zero out garbage rows
        row_id = s * rows_tile + jax.lax.broadcasted_iota(
            jnp.int32, (rows_tile, 128), 0)
        valid = row_id < n_rows
        m0 = jnp.where(valid, m0, 0.0)

    # (a*m - b*m) == (a - b)*m  -> one multiply per element.
    # Operands are upcast to f32 before the subtract so bf16-streamed features keep
    # reference numerics (the f32 subtract of two bf16 values is exact).
    fi = f_inp_ref[0].astype(jnp.float32)                         # (C, rows_tile, 128)
    fr = f_rend_ref[0].astype(jnp.float32)
    d = (fi - fr) * m0[None]
    dd = jnp.sum(d * d, axis=0)                                   # VPU adds over C
    if ragged:
        dd = jnp.where(valid, dd, 0.0)   # guard NaN/Inf from OOB garbage rows

    # fold into (<=8, 128) vreg-shaped accumulators with plain VPU adds; the
    # reshape is along full (8,128) tile boundaries -> layout-free.
    acc_rows = dsum_ref.shape[0]
    if rows_tile != acc_rows:
        dd = dd.reshape(rows_tile // acc_rows, acc_rows, 128).sum(axis=0)
        mm = m0.reshape(rows_tile // acc_rows, acc_rows, 128).sum(axis=0)
    else:
        mm = m0
    dsum_ref[...] = dsum_ref[...] + dd
    msum_ref[...] = msum_ref[...] + mm

    # ---- finalize at the last spatial tile: diff loss + pose losses ----
    @pl.when(s == ns - 1)
    def _():
        diff_loss = jnp.sum(dsum_ref[...]) / (jnp.sum(msum_ref[...]) + 1e-10)

        # lane/sublane-dense vertex coordinate planes, zero-padded past n_vert
        vx = verts_ref[0, 0].astype(jnp.float32)                  # (Rv, 128)
        vy = verts_ref[0, 1].astype(jnp.float32)
        vz = verts_ref[0, 2].astype(jnp.float32)
        rows, lanes = vx.shape
        idx = (jax.lax.broadcasted_iota(jnp.int32, (rows, lanes), 0) * lanes
               + jax.lax.broadcasted_iota(jnp.int32, (rows, lanes), 1))
        vmask = (idx < n_vert).astype(jnp.float32)

        def transform(rm, tt):
            # v[:, j] = sum_k verts[:, k] * Rm[j, k] + t[j]  (== bmm(verts, Rm^T) + t)
            base = b * 9
            return [vx * rm[base + 3 * j + 0]
                    + vy * rm[base + 3 * j + 1]
                    + vz * rm[base + 3 * j + 2]
                    + tt[b * 3 + j]
                    for j in range(3)]

        g = transform(rm_gt_ref, t_gt_ref)        # v_gt
        vi = transform(rm_ini_ref, t_ini_ref)     # v_ini
        vp = transform(rm_ref, t_ref)             # v

        d_ini = jnp.sqrt((vi[0] - g[0]) ** 2 + (vi[1] - g[1]) ** 2
                         + (vi[2] - g[2]) ** 2)
        d_pos = jnp.sqrt((vp[0] - g[0]) ** 2 + (vp[1] - g[1]) ** 2
                         + (vp[2] - g[2]) ** 2)
        inv_n = 1.0 / float(n_vert)
        p_ini = jnp.sum(d_ini * vmask) * inv_n
        p_pos = jnp.sum(d_pos * vmask) * inv_n

        # pack the three scalars into one lane-dense (3, 128) slab: one output DMA.
        sub = jax.lax.broadcasted_iota(jnp.int32, (3, 128), 0)
        packed = jnp.where(sub == 0, diff_loss,
                           jnp.where(sub == 1, p_ini, p_pos))
        out_ref[...] = packed[None].astype(out_ref.dtype)


def pallas_losses(f_inp, f_rend, gt_mask, vertices, rm_gt, t_gt, rm_ini, t_ini, rm, t):
    """Returns per-batch (diff_loss, pose_ini_loss, pose_loss), each shape (B,)."""
    B, C, H, W = f_inp.shape
    N = vertices.shape[1]
    HW = H * W
    f_item = jnp.dtype(f_inp.dtype).itemsize
    m_item = jnp.dtype(gt_mask.dtype).itemsize
    v_item = jnp.dtype(vertices.dtype).itemsize

    # ---- lane-dense (B, C, R, 128) feature slabs; zero-copy when HW % 128 == 0 ----
    HW_pad = _round_up(HW, 128)
    R = HW_pad // 128

    def to_slab(x, ch):
        x = x.reshape(B, ch, HW)
        if HW_pad != HW:
            # TODO(synk): this sub-128 pad materializes an HBM copy; real feature
            # maps with H*W % 128 == 0 take the zero-copy reshape path.
            x = jnp.pad(x, ((0, 0), (0, 0), (0, HW_pad - HW)))
        return x.reshape(B, ch, R, 128)

    # Features/mask stream at their native dtype (bf16 OK; kernel upcasts to f32).
    f_inp_s = to_slab(f_inp, C)
    f_rend_s = to_slab(f_rend, C)
    mask_s = to_slab(gt_mask, 1)

    # ---- spatial tiling: generation-aware per-stream block cap ----
    vmem_cap = _vmem_capacity_bytes()
    stream_cap = 8 * _MIB if vmem_cap > 96 * _MIB else 6 * _MIB    # v5e/v6e vs v7x
    rows_cap = max(8, (stream_cap // max(1, C * 128 * f_item)) // 8 * 8)
    rows_tile = R if R <= rows_cap else rows_cap                   # full-extent or mult of 8
    n_tiles = (R + rows_tile - 1) // rows_tile
    ragged = (R % rows_tile) != 0
    acc_rows = 8 if rows_tile % 8 == 0 else rows_tile

    # ---- lane-dense vertex coordinate planes (B, 3, Rv, 128), zero padded ----
    N_pad = _round_up(N, 128)
    Rv = N_pad // 128
    verts_t = jnp.transpose(vertices, (0, 2, 1))                   # (B, 3, N)
    if N_pad != N:
        verts_t = jnp.pad(verts_t, ((0, 0), (0, 0), (0, N_pad - N)))
    verts_t = verts_t.reshape(B, 3, Rv, 128)

    # ---- flattened 1-D scalar pose tables for SMEM (tiny footprint) ----
    f32 = jnp.float32
    rm_gt_f = rm_gt.astype(f32).reshape(-1)      # (B*9,)
    t_gt_f = t_gt.astype(f32).reshape(-1)        # (B*3,)
    rm_ini_f = rm_ini.astype(f32).reshape(-1)
    t_ini_f = t_ini.astype(f32).reshape(-1)
    rm_f = rm.astype(f32).reshape(-1)
    t_f = t.astype(f32).reshape(-1)

    smem = pl.BlockSpec(memory_space=pltpu.MemorySpace.SMEM)

    # ---- explicit VMEM budget (double-buffered pipeline blocks + scratch) ----
    f_block_b = C * rows_tile * 128 * f_item
    m_block_b = rows_tile * 128 * m_item
    v_block_b = 3 * Rv * 128 * v_item
    out_block_b = 3 * 128 * 4
    need = 2 * (2 * f_block_b + m_block_b + v_block_b + out_block_b) \
        + 2 * acc_rows * 128 * 4 + 2 * _MIB
    vmem_limit = int(min(max(need, 24 * _MIB), max(vmem_cap - 16 * _MIB, need)))

    cost = pl.CostEstimate(
        flops=int(5 * B * C * R * 128 + 30 * B * 3 * Rv * 128),
        transcendentals=int(2 * B * Rv * 128),
        bytes_accessed=int(2 * B * C * R * 128 * f_item + B * R * 128 * m_item
                           + B * 3 * Rv * 128 * v_item + B * 3 * 128 * 4),
    )

    out = pl.pallas_call(
        functools.partial(_loss_kernel, N, R, ragged),
        out_shape=jax.ShapeDtypeStruct((B, 3, 128), jnp.float32),
        grid_spec=pltpu.PrefetchScalarGridSpec(
            num_scalar_prefetch=0,
            grid=(B, n_tiles),
            in_specs=[
                pl.BlockSpec((1, C, rows_tile, 128), lambda b, s: (b, 0, s, 0)),  # f_inp
                pl.BlockSpec((1, C, rows_tile, 128), lambda b, s: (b, 0, s, 0)),  # f_rend
                pl.BlockSpec((1, 1, rows_tile, 128), lambda b, s: (b, 0, s, 0)),  # gt_mask
                pl.BlockSpec((1, 3, Rv, 128), lambda b, s: (b, 0, 0, 0)),         # vertices
                smem, smem,              # Rm_gt, t_gt
                smem, smem,              # Rm_ini, t_ini
                smem, smem,              # Rm,     t
            ],
            out_specs=pl.BlockSpec((1, 3, 128), lambda b, s: (b, 0, 0)),
            scratch_shapes=[pltpu.VMEM((acc_rows, 128), jnp.float32),  # diff partial sums
                            pltpu.VMEM((acc_rows, 128), jnp.float32)], # mask partial sums
        ),
        compiler_params=pltpu.CompilerParams(
            dimension_semantics=("parallel", "arbitrary"),
            vmem_limit_bytes=vmem_limit),
        cost_estimate=cost,
    )(f_inp_s, f_rend_s, mask_s, verts_t,
      rm_gt_f, t_gt_f, rm_ini_f, t_ini_f, rm_f, t_f)

    return out[:, 0, 0], out[:, 1, 0], out[:, 2, 0]


# ----------------------------------------------------------------------------- synthetic net
class SyntheticNet:
    """Deterministic stand-in for the real RDOpt render-and-compare network."""
    # TODO(synk): the real `self.net` (feature extractor + differentiable renderer
    # + pose refiner) is an external module and is not reproduced here.

    def __init__(self, key, num_vertices=64):
        self.vertices = jax.random.uniform(key, (num_vertices, 3),
                                           minval=-0.1, maxval=0.1,
                                           dtype=jnp.float32)

    def __call__(self, inp, mask, K, x_ini, bbox, kpt_3d, R, t, use_random):
        B = inp.shape[0]
        f_inp = inp
        f_rend = 0.9 * inp + 0.05 * jnp.roll(inp, 1, axis=1)
        gt_mask = mask[:, None, :, :].astype(jnp.float32)              # (B,1,H,W)
        vertices = jnp.broadcast_to(self.vertices[None],
                                    (B,) + self.vertices.shape)        # (B,N,3)
        R_ini = x_ini[:, :3]
        t_ini = x_ini[:, 3:6]
        R_pred = R_ini + 0.03
        t_pred = t_ini + 0.01
        return {'gt_mask': gt_mask, 'f_inp': f_inp, 'f_rend': f_rend,
                'vertices': vertices, 'R_ini': R_ini, 't_ini': t_ini,
                'R': R_pred, 't': t_pred}


# ----------------------------------------------------------------------------- wrapper forward
def network_wrapper_forward(net, batch, training=True):
    output = net(batch['inp'], batch['mask'], batch['K'], batch['x_ini'],
                 batch['bbox'], batch['kpt_3d'], batch['R'], batch['t'],
                 batch['use_random'])

    Rm_gt = rot_vec_to_mat(batch['R'])            # (B,3,3) (kernel applies the transpose)
    Rm_ini = rot_vec_to_mat(output['R_ini'])
    Rm = rot_vec_to_mat(output['R'])
    t_gt = batch['t'].reshape(-1, 3)
    t_ini = output['t_ini'].reshape(-1, 3)
    t_pr = output['t'].reshape(-1, 3)

    diff_loss, pose_ini_loss, pose_loss_vec = pallas_losses(
        output['f_inp'], output['f_rend'], output['gt_mask'], output['vertices'],
        Rm_gt, t_gt, Rm_ini, t_ini, Rm, t_pr)

    scalar_stats = {}
    loss = jnp.float32(0.0)
    if training:
        scalar_stats['diff_loss'] = diff_loss.mean()
        loss = loss + 0.1 * diff_loss.sum()
    # cfg.cls_type not in ['eggbox', 'glue'] path (per-vertex L2, mean over vertices).
    # TODO(synk): symmetric-object cdist/min branch (eggbox/glue) not implemented.
    scalar_stats['pose_ini_loss'] = pose_ini_loss.mean()
    scalar_stats['pose_loss'] = pose_loss_vec.mean()
    loss = loss + pose_loss_vec.sum()
    scalar_stats['loss'] = loss
    image_stats = {}
    return output, loss, scalar_stats, image_stats


# ----------------------------------------------------------------------------- reference
def reference_forward_loss(net, batch):
    out = net(batch['inp'], batch['mask'], batch['K'], batch['x_ini'],
              batch['bbox'], batch['kpt_3d'], batch['R'], batch['t'],
              batch['use_random'])
    B = batch['inp'].shape[0]
    gm = out['gt_mask']
    fi = out['f_inp'] * gm
    fr = out['f_rend'] * gm
    diff = ((fi - fr) ** 2).reshape(B, -1).sum(1) / (gm.reshape(B, -1).sum(1) + 1e-10)

    def tf(vts, Rv, tv):
        Rm_T = jnp.transpose(rot_vec_to_mat(Rv), (0, 2, 1))
        return jnp.matmul(vts, Rm_T) + tv.reshape(-1, 1, 3)

    v_gt = tf(out['vertices'], batch['R'], batch['t'])
    v_ini = tf(out['vertices'], out['R_ini'], out['t_ini'])
    v = tf(out['vertices'], out['R'], out['t'])
    p_ini = jnp.sqrt(jnp.sum((v_ini - v_gt) ** 2, -1)).mean(1)
    p = jnp.sqrt(jnp.sum((v - v_gt) ** 2, -1)).mean(1)
    return 0.1 * diff.sum() + p.sum()


# ----------------------------------------------------------------------------- main
if __name__ == "__main__":
    B, C, H, W, N_KPT, N_VERT = 2, 4, 16, 16, 8, 64
    key = jax.random.PRNGKey(0)
    ks = jax.random.split(key, 8)

    batch = {
        'inp': jax.random.normal(ks[0], (B, C, H, W), dtype=jnp.float32),
        'mask': (jax.random.uniform(ks[1], (B, H, W)) > 0.5).astype(jnp.float32),
        'K': jnp.broadcast_to(jnp.eye(3, dtype=jnp.float32)[None], (B, 3, 3)),
        'x_ini': jax.random.normal(ks[2], (B, 6), dtype=jnp.float32) * 0.5,
        'bbox': jax.random.uniform(ks[3], (B, 4), dtype=jnp.float32),
        'kpt_3d': jax.random.normal(ks[4], (B, N_KPT, 3), dtype=jnp.float32) * 0.1,
        'R': jax.random.normal(ks[5], (B, 3), dtype=jnp.float32) * 0.5,
        't': jax.random.normal(ks[6], (B, 3), dtype=jnp.float32) * 0.2,
        'use_random': False,
    }

    net = SyntheticNet(ks[7], num_vertices=N_VERT)

    output, loss, scalar_stats, image_stats = network_wrapper_forward(
        net, batch, training=True)
    loss = jax.block_until_ready(loss)

    ref_loss = jax.block_until_ready(reference_forward_loss(net, batch))
    np.testing.assert_allclose(np.asarray(loss), np.asarray(ref_loss),
                               rtol=1e-4, atol=1e-5)

    print("KERNEL_OK")
</pallas_src>

<mosaic_0001>
module attributes {stable_mosaic.version = 11 : i64} {
  func.func @_loss_kernel(%arg0: i32, %arg1: i32, %arg2: memref<1x4x2x128xf32, #tpu.memory_space<vmem>>, %arg3: memref<1x4x2x128xf32, #tpu.memory_space<vmem>>, %arg4: memref<1x1x2x128xf32, #tpu.memory_space<vmem>>, %arg5: memref<1x3x1x128xf32, #tpu.memory_space<vmem>>, %arg6: memref<18xf32, #tpu.memory_space<smem>>, %arg7: memref<6xf32, #tpu.memory_space<smem>>, %arg8: memref<18xf32, #tpu.memory_space<smem>>, %arg9: memref<6xf32, #tpu.memory_space<smem>>, %arg10: memref<18xf32, #tpu.memory_space<smem>>, %arg11: memref<6xf32, #tpu.memory_space<smem>>, %arg12: memref<1x3x128xf32, #tpu.memory_space<vmem>>, %arg13: memref<2x128xf32, #tpu.memory_space<vmem>>, %arg14: memref<2x128xf32, #tpu.memory_space<vmem>>) attributes {dimension_semantics = [#tpu.dimension_semantics<parallel>, #tpu.dimension_semantics<arbitrary>], iteration_bounds = array<i64: 2, 1>, scalar_prefetch = 0 : i64, scratch_operands = 2 : i64, tpu.core_type = #tpu.core_type<tc>, window_params = [{transform_indices = @transform_0, window_bounds = array<i64: 1, 4, 2, 128>}, {transform_indices = @transform_1, window_bounds = array<i64: 1, 4, 2, 128>}, {transform_indices = @transform_2, window_bounds = array<i64: 1, 1, 2, 128>}, {transform_indices = @transform_3, window_bounds = array<i64: 1, 3, 1, 128>}, {transform_indices = @transform_4, window_bounds = array<i64: 18>}, {transform_indices = @transform_5, window_bounds = array<i64: 6>}, {transform_indices = @transform_6, window_bounds = array<i64: 18>}, {transform_indices = @transform_7, window_bounds = array<i64: 6>}, {transform_indices = @transform_8, window_bounds = array<i64: 18>}, {transform_indices = @transform_9, window_bounds = array<i64: 6>}, {transform_indices = @transform_10, window_bounds = array<i64: 1, 3, 128>}]} {
    %c0_i32 = arith.constant 0 : i32
    %0 = arith.cmpi eq, %arg1, %c0_i32 : i32
    %1 = arith.extui %0 : i1 to i32
    %c0_i32_0 = arith.constant 0 : i32
    %2 = arith.cmpi ne, %1, %c0_i32_0 : i32
    scf.if %2 {
      %cst_22 = arith.constant 0.000000e+00 : f32
      %24 = vector.broadcast %cst_22 : f32 to vector<2x128xf32>
      %c0_23 = arith.constant 0 : index
      %c0_24 = arith.constant 0 : index
      %25 = vector.load %arg13[%c0_23, %c0_24] : memref<2x128xf32, #tpu.memory_space<vmem>>, vector<2x128xf32>
      tpu.vector_store %arg13[%c0_23, %c0_24], %24 {strides = array<i32>} : memref<2x128xf32, #tpu.memory_space<vmem>>, vector<2x128xf32>,
      %cst_25 = arith.constant 0.000000e+00 : f32
      %26 = vector.broadcast %cst_25 : f32 to vector<2x128xf32>
      %c0_26 = arith.constant 0 : index
      %c0_27 = arith.constant 0 : index
      %27 = vector.load %arg14[%c0_26, %c0_27] : memref<2x128xf32, #tpu.memory_space<vmem>>, vector<2x128xf32>
      tpu.vector_store %arg14[%c0_26, %c0_27], %26 {strides = array<i32>} : memref<2x128xf32, #tpu.memory_space<vmem>>, vector<2x128xf32>,
    } else {
    }
    %c0 = arith.constant 0 : index
    %c0_1 = arith.constant 0 : index
    %c0_2 = arith.constant 0 : index
    %c0_3 = arith.constant 0 : index
    %3 = vector.load %arg4[%c0, %c0_1, %c0_2, %c0_3] : memref<1x1x2x128xf32, #tpu.memory_space<vmem>>, vector<1x1x2x128xf32>
    %4 = vector.shape_cast %3 : vector<1x1x2x128xf32> to vector<2x128xf32>
    %c0_4 = arith.constant 0 : index
    %c0_5 = arith.constant 0 : index
    %c0_6 = arith.constant 0 : index
    %c0_7 = arith.constant 0 : index
    %5 = vector.load %arg2[%c0_4, %c0_5, %c0_6, %c0_7] : memref<1x4x2x128xf32, #tpu.memory_space<vmem>>, vector<1x4x2x128xf32>
    %6 = vector.shape_cast %5 : vector<1x4x2x128xf32> to vector<4x2x128xf32>
    %c0_8 = arith.constant 0 : index
    %c0_9 = arith.constant 0 : index
    %c0_10 = arith.constant 0 : index
    %c0_11 = arith.constant 0 : index
    %7 = vector.load %arg3[%c0_8, %c0_9, %c0_10, %c0_11] : memref<1x4x2x128xf32, #tpu.memory_space<vmem>>, vector<1x4x2x128xf32>
    %8 = vector.shape_cast %7 : vector<1x4x2x128xf32> to vector<4x2x128xf32>
    %9 = arith.subf %6, %8 : vector<4x2x128xf32>
    %10 = vector.shape_cast %4 : vector<2x128xf32> to vector<1x2x128xf32>
    %11 = vector.broadcast %10 : vector<1x2x128xf32> to vector<4x2x128xf32>
    %12 = arith.mulf %9, %11 : vector<4x2x128xf32>
    %13 = arith.mulf %12, %12 : vector<4x2x128xf32>
    %cst = arith.constant dense<0.000000e+00> : vector<2x128xf32>
    %14 = vector.multi_reduction <add>, %13, %cst [0] : vector<4x2x128xf32> to vector<2x128xf32>
    %c0_12 = arith.constant 0 : index
    %c0_13 = arith.constant 0 : index
    %15 = vector.load %arg13[%c0_12, %c0_13] : memref<2x128xf32, #tpu.memory_space<vmem>>, vector<2x128xf32>
    %16 = arith.addf %15, %14 : vector<2x128xf32>
    %c0_14 = arith.constant 0 : index
    %c0_15 = arith.constant 0 : index
    %17 = vector.load %arg13[%c0_14, %c0_15] : memref<2x128xf32, #tpu.memory_space<vmem>>, vector<2x128xf32>
    tpu.vector_store %arg13[%c0_14, %c0_15], %16 {strides = array<i32>} : memref<2x128xf32, #tpu.memory_space<vmem>>, vector<2x128xf32>,
    %c0_16 = arith.constant 0 : index
    %c0_17 = arith.constant 0 : index
    %18 = vector.load %arg14[%c0_16, %c0_17] : memref<2x128xf32, #tpu.memory_space<vmem>>, vector<2x128xf32>
    %19 = arith.addf %18, %4 : vector<2x128xf32>
    %c0_18 = arith.constant 0 : index
    %c0_19 = arith.constant 0 : index
    %20 = vector.load %arg14[%c0_18, %c0_19] : memref<2x128xf32, #tpu.memory_space<vmem>>, vector<2x128xf32>
    tpu.vector_store %arg14[%c0_18, %c0_19], %19 {strides = array<i32>} : memref<2x128xf32, #tpu.memory_space<vmem>>, vector<2x128xf32>,
    %c0_i32_20 = arith.constant 0 : i32
    %21 = arith.cmpi eq, %arg1, %c0_i32_20 : i32
    %22 = arith.extui %21 : i1 to i32
    %c0_i32_21 = arith.constant 0 : i32
    %23 = arith.cmpi ne, %22, %c0_i32_21 : i32
    scf.if %23 {
      %c0_22 = arith.constant 0 : index
      %c0_23 = arith.constant 0 : index
      %24 = vector.load %arg13[%c0_22, %c0_23] : memref<2x128xf32, #tpu.memory_space<vmem>>, vector<2x128xf32>
      %25 = vector.shape_cast %24 : vector<2x128xf32> to vector<1x2x128xf32>
      %cst_24 = arith.constant dense<0.000000e+00> : vector<1xf32>
      %26 = vector.multi_reduction <add>, %25, %cst_24 [1, 2] : vector<1x2x128xf32> to vector<1xf32>
      %27 = vector.shape_cast %26 : vector<1xf32> to vector<1x1x1xf32>
      %28 = vector.extract %27[0, 0, 0] : f32 from vector<1x1x1xf32>
      %c0_25 = arith.constant 0 : index
      %c0_26 = arith.constant 0 : index
      %29 = vector.load %arg14[%c0_25, %c0_26] : memref<2x128xf32, #tpu.memory_space<vmem>>, vector<2x128xf32>
      %30 = vector.shape_cast %29 : vector<2x128xf32> to vector<1x2x128xf32>
      %cst_27 = arith.constant dense<0.000000e+00> : vector<1xf32>
      %31 = vector.multi_reduction <add>, %30, %cst_27 [1, 2] : vector<1x2x128xf32> to vector<1xf32>
      %32 = vector.shape_cast %31 : vector<1xf32> to vector<1x1x1xf32>
      %33 = vector.extract %32[0, 0, 0] : f32 from vector<1x1x1xf32>
      %cst_28 = arith.constant 1.000000e-10 : f32
      %34 = arith.addf %33, %cst_28 : f32
      %35 = arith.divf %28, %34 : f32
      %c0_29 = arith.constant 0 : index
      %c0_30 = arith.constant 0 : index
      %c0_31 = arith.constant 0 : index
      %c0_32 = arith.constant 0 : index
      %36 = vector.load %arg5[%c0_29, %c0_30, %c0_31, %c0_32] : memref<1x3x1x128xf32, #tpu.memory_space<vmem>>, vector<1x1x1x128xf32>
      %37 = vector.shape_cast %36 : vector<1x1x1x128xf32> to vector<1x128xf32>
      %c0_33 = arith.constant 0 : index
      %c1 = arith.constant 1 : index
      %c0_34 = arith.constant 0 : index
      %c0_35 = arith.constant 0 : index
      %38 = vector.load %arg5[%c0_33, %c1, %c0_34, %c0_35] : memref<1x3x1x128xf32, #tpu.memory_space<vmem>>, vector<1x1x1x128xf32>
      %39 = vector.shape_cast %38 : vector<1x1x1x128xf32> to vector<1x128xf32>
      %c0_36 = arith.constant 0 : index
      %c2 = arith.constant 2 : index
      %c0_37 = arith.constant 0 : index
      %c0_38 = arith.constant 0 : index
      %40 = vector.load %arg5[%c0_36, %c2, %c0_37, %c0_38] : memref<1x3x1x128xf32, #tpu.memory_space<vmem>>, vector<1x1x1x128xf32>
      %41 = vector.shape_cast %40 : vector<1x1x1x128xf32> to vector<1x128xf32>
      %42 = tpu.iota {dimensions = array<i32: 0>} : vector<1x128xi32>
      %c128_i32 = arith.constant 128 : i32
      %43 = vector.broadcast %c128_i32 : i32 to vector<1x128xi32>
      %44 = arith.muli %42, %43 : vector<1x128xi32>
      %45 = tpu.iota {dimensions = array<i32: 1>} : vector<1x128xi32>
      %46 = arith.addi %44, %45 : vector<1x128xi32>
      %c64_i32 = arith.constant 64 : i32
      %47 = vector.broadcast %c64_i32 : i32 to vector<1x128xi32>
      %48 = arith.cmpi slt, %46, %47 : vector<1x128xi32>
      %49 = arith.extui %48 : vector<1x128xi1> to vector<1x128xi32>
      %50 = arith.sitofp %49 : vector<1x128xi32> to vector<1x128xf32>
      %c9_i32 = arith.constant 9 : i32
      %51 = arith.muli %arg0, %c9_i32 : i32
      %c0_i32_39 = arith.constant 0 : i32
      %52 = arith.addi %51, %c0_i32_39 : i32
      %c0_i32_40 = arith.constant 0 : i32
      %53 = arith.addi %52, %c0_i32_40 : i32
      %54 = arith.index_cast %53 : i32 to index
      %55 = memref.load %arg6[%54] : memref<18xf32, #tpu.memory_space<smem>>
      %56 = vector.broadcast %55 : f32 to vector<1x128xf32>
      %57 = arith.mulf %37, %56 : vector<1x128xf32>
      %c0_i32_41 = arith.constant 0 : i32
      %58 = arith.addi %51, %c0_i32_41 : i32
      %c1_i32 = arith.constant 1 : i32
      %59 = arith.addi %58, %c1_i32 : i32
      %60 = arith.index_cast %59 : i32 to index
      %61 = memref.load %arg6[%60] : memref<18xf32, #tpu.memory_space<smem>>
      %62 = vector.broadcast %61 : f32 to vector<1x128xf32>
      %63 = arith.mulf %39, %62 : vector<1x128xf32>
      %64 = arith.addf %57, %63 : vector<1x128xf32>
      %c0_i32_42 = arith.constant 0 : i32
      %65 = arith.addi %51, %c0_i32_42 : i32
      %c2_i32 = arith.constant 2 : i32
      %66 = arith.addi %65, %c2_i32 : i32
      %67 = arith.index_cast %66 : i32 to index
      %68 = memref.load %arg6[%67] : memref<18xf32, #tpu.memory_space<smem>>
      %69 = vector.broadcast %68 : f32 to vector<1x128xf32>
      %70 = arith.mulf %41, %69 : vector<1x128xf32>
      %71 = arith.addf %64, %70 : vector<1x128xf32>
      %c3_i32 = arith.constant 3 : i32
      %72 = arith.muli %arg0, %c3_i32 : i32
      %c0_i32_43 = arith.constant 0 : i32
      %73 = arith.addi %72, %c0_i32_43 : i32
      %74 = arith.index_cast %73 : i32 to index
      %75 = memref.load %arg7[%74] : memref<6xf32, #tpu.memory_space<smem>>
      %76 = vector.broadcast %75 : f32 to vector<1x128xf32>
      %77 = arith.addf %71, %76 : vector<1x128xf32>
      %c3_i32_44 = arith.constant 3 : i32
      %78 = arith.addi %51, %c3_i32_44 : i32
      %c0_i32_45 = arith.constant 0 : i32
      %79 = arith.addi %78, %c0_i32_45 : i32
      %80 = arith.index_cast %79 : i32 to index
      %81 = memref.load %arg6[%80] : memref<18xf32, #tpu.memory_space<smem>>
      %82 = vector.broadcast %81 : f32 to vector<1x128xf32>
      %83 = arith.mulf %37, %82 : vector<1x128xf32>
      %c3_i32_46 = arith.constant 3 : i32
      %84 = arith.addi %51, %c3_i32_46 : i32
      %c1_i32_47 = arith.constant 1 : i32
      %85 = arith.addi %84, %c1_i32_47 : i32
      %86 = arith.index_cast %85 : i32 to index
      %87 = memref.load %arg6[%86] : memref<18xf32, #tpu.memory_space<smem>>
      %88 = vector.broadcast %87 : f32 to vector<1x128xf32>
      %89 = arith.mulf %39, %88 : vector<1x128xf32>
      %90 = arith.addf %83, %89 : vector<1x128xf32>
      %c3_i32_48 = arith.constant 3 : i32
      %91 = arith.addi %51, %c3_i32_48 : i32
      %c2_i32_49 = arith.constant 2 : i32
      %92 = arith.addi %91, %c2_i32_49 : i32
      %93 = arith.index_cast %92 : i32 to index
      %94 = memref.load %arg6[%93] : memref<18xf32, #tpu.memory_space<smem>>
      %95 = vector.broadcast %94 : f32 to vector<1x128xf32>
      %96 = arith.mulf %41, %95 : vector<1x128xf32>
      %97 = arith.addf %90, %96 : vector<1x128xf32>
      %c3_i32_50 = arith.constant 3 : i32
      %98 = arith.muli %arg0, %c3_i32_50 : i32
      %c1_i32_51 = arith.constant 1 : i32
      %99 = arith.addi %98, %c1_i32_51 : i32
      %100 = arith.index_cast %99 : i32 to index
      %101 = memref.load %arg7[%100] : memref<6xf32, #tpu.memory_space<smem>>
      %102 = vector.broadcast %101 : f32 to vector<1x128xf32>
      %103 = arith.addf %97, %102 : vector<1x128xf32>
      %c6_i32 = arith.constant 6 : i32
      %104 = arith.addi %51, %c6_i32 : i32
      %c0_i32_52 = arith.constant 0 : i32
      %105 = arith.addi %104, %c0_i32_52 : i32
      %106 = arith.index_cast %105 : i32 to index
      %107 = memref.load %arg6[%106] : memref<18xf32, #tpu.memory_space<smem>>
      %108 = vector.broadcast %107 : f32 to vector<1x128xf32>
      %109 = arith.mulf %37, %108 : vector<1x128xf32>
      %c6_i32_53 = arith.constant 6 : i32
      %110 = arith.addi %51, %c6_i32_53 : i32
      %c1_i32_54 = arith.constant 1 : i32
      %111 = arith.addi %110, %c1_i32_54 : i32
      %112 = arith.index_cast %111 : i32 to index
      %113 = memref.load %arg6[%112] : memref<18xf32, #tpu.memory_space<smem>>
      %114 = vector.broadcast %113 : f32 to vector<1x128xf32>
      %115 = arith.mulf %39, %114 : vector<1x128xf32>
      %116 = arith.addf %109, %115 : vector<1x128xf32>
      %c6_i32_55 = arith.constant 6 : i32
      %117 = arith.addi %51, %c6_i32_55 : i32
      %c2_i32_56 = arith.constant 2 : i32
      %118 = arith.addi %117, %c2_i32_56 : i32
      %119 = arith.index_cast %118 : i32 to index
      %120 = memref.load %arg6[%119] : memref<18xf32, #tpu.memory_space<smem>>
      %121 = vector.broadcast %120 : f32 to vector<1x128xf32>
      %122 = arith.mulf %41, %121 : vector<1x128xf32>
      %123 = arith.addf %116, %122 : vector<1x128xf32>
      %c3_i32_57 = arith.constant 3 : i32
      %124 = arith.muli %arg0, %c3_i32_57 : i32
      %c2_i32_58 = arith.constant 2 : i32
      %125 = arith.addi %124, %c2_i32_58 : i32
      %126 = arith.index_cast %125 : i32 to index
      %127 = memref.load %arg7[%126] : memref<6xf32, #tpu.memory_space<smem>>
      %128 = vector.broadcast %127 : f32 to vector<1x128xf32>
      %129 = arith.addf %123, %128 : vector<1x128xf32>
      %c9_i32_59 = arith.constant 9 : i32
      %130 = arith.muli %arg0, %c9_i32_59 : i32
      %c0_i32_60 = arith.constant 0 : i32
      %131 = arith.addi %130, %c0_i32_60 : i32
      %c0_i32_61 = arith.constant 0 : i32
      %132 = arith.addi %131, %c0_i32_61 : i32
      %133 = arith.index_cast %132 : i32 to index
      %134 = memref.load %arg8[%133] : memref<18xf32, #tpu.memory_space<smem>>
      %135 = vector.broadcast %134 : f32 to vector<1x128xf32>
      %136 = arith.mulf %37, %135 : vector<1x128xf32>
      %c0_i32_62 = arith.constant 0 : i32
      %137 = arith.addi %130, %c0_i32_62 : i32
      %c1_i32_63 = arith.constant 1 : i32
      %138 = arith.addi %137, %c1_i32_63 : i32
      %139 = arith.index_cast %138 : i32 to index
      %140 = memref.load %arg8[%139] : memref<18xf32, #tpu.memory_space<smem>>
      %141 = vector.broadcast %140 : f32 to vector<1x128xf32>
      %142 = arith.mulf %39, %141 : vector<1x128xf32>
      %143 = arith.addf %136, %142 : vector<1x128xf32>
      %c0_i32_64 = arith.constant 0 : i32
      %144 = arith.addi %130, %c0_i32_64 : i32
      %c2_i32_65 = arith.constant 2 : i32
      %145 = arith.addi %144, %c2_i32_65 : i32
      %146 = arith.index_cast %145 : i32 to index
      %147 = memref.load %arg8[%146] : memref<18xf32, #tpu.memory_space<smem>>
      %148 = vector.broadcast %147 : f32 to vector<1x128xf32>
      %149 = arith.mulf %41, %148 : vector<1x128xf32>
      %150 = arith.addf %143, %149 : vector<1x128xf32>
      %c3_i32_66 = arith.constant 3 : i32
      %151 = arith.muli %arg0, %c3_i32_66 : i32
      %c0_i32_67 = arith.constant 0 : i32
      %152 = arith.addi %151, %c0_i32_67 : i32
      %153 = arith.index_cast %152 : i32 to index
      %154 = memref.load %arg9[%153] : memref<6xf32, #tpu.memory_space<smem>>
      %155 = vector.broadcast %154 : f32 to vector<1x128xf32>
      %156 = arith.addf %150, %155 : vector<1x128xf32>
      %c3_i32_68 = arith.constant 3 : i32
      %157 = arith.addi %130, %c3_i32_68 : i32
      %c0_i32_69 = arith.constant 0 : i32
      %158 = arith.addi %157, %c0_i32_69 : i32
      %159 = arith.index_cast %158 : i32 to index
      %160 = memref.load %arg8[%159] : memref<18xf32, #tpu.memory_space<smem>>
      %161 = vector.broadcast %160 : f32 to vector<1x128xf32>
      %162 = arith.mulf %37, %161 : vector<1x128xf32>
      %c3_i32_70 = arith.constant 3 : i32
      %163 = arith.addi %130, %c3_i32_70 : i32
      %c1_i32_71 = arith.constant 1 : i32
      %164 = arith.addi %163, %c1_i32_71 : i32
      %165 = arith.index_cast %164 : i32 to index
      %166 = memref.load %arg8[%165] : memref<18xf32, #tpu.memory_space<smem>>
      %167 = vector.broadcast %166 : f32 to vector<1x128xf32>
      %168 = arith.mulf %39, %167 : vector<1x128xf32>
      %169 = arith.addf %162, %168 : vector<1x128xf32>
      %c3_i32_72 = arith.constant 3 : i32
      %170 = arith.addi %130, %c3_i32_72 : i32
      %c2_i32_73 = arith.constant 2 : i32
      %171 = arith.addi %170, %c2_i32_73 : i32
      %172 = arith.index_cast %171 : i32 to index
      %173 = memref.load %arg8[%172] : memref<18xf32, #tpu.memory_space<smem>>
      %174 = vector.broadcast %173 : f32 to vector<1x128xf32>
      %175 = arith.mulf %41, %174 : vector<1x128xf32>
      %176 = arith.addf %169, %175 : vector<1x128xf32>
      %c3_i32_74 = arith.constant 3 : i32
      %177 = arith.muli %arg0, %c3_i32_74 : i32
      %c1_i32_75 = arith.constant 1 : i32
      %178 = arith.addi %177, %c1_i32_75 : i32
      %179 = arith.index_cast %178 : i32 to index
      %180 = memref.load %arg9[%179] : memref<6xf32, #tpu.memory_space<smem>>
      %181 = vector.broadcast %180 : f32 to vector<1x128xf32>
      %182 = arith.addf %176, %181 : vector<1x128xf32>
      %c6_i32_76 = arith.constant 6 : i32
      %183 = arith.addi %130, %c6_i32_76 : i32
      %c0_i32_77 = arith.constant 0 : i32
      %184 = arith.addi %183, %c0_i32_77 : i32
      %185 = arith.index_cast %184 : i32 to index
      %186 = memref.load %arg8[%185] : memref<18xf32, #tpu.memory_space<smem>>
      %187 = vector.broadcast %186 : f32 to vector<1x128xf32>
      %188 = arith.mulf %37, %187 : vector<1x128xf32>
      %c6_i32_78 = arith.constant 6 : i32
      %189 = arith.addi %130, %c6_i32_78 : i32
      %c1_i32_79 = arith.constant 1 : i32
      %190 = arith.addi %189, %c1_i32_79 : i32
      %191 = arith.index_cast %190 : i32 to index
      %192 = memref.load %arg8[%191] : memref<18xf32, #tpu.memory_space<smem>>
      %193 = vector.broadcast %192 : f32 to vector<1x128xf32>
      %194 = arith.mulf %39, %193 : vector<1x128xf32>
      %195 = arith.addf %188, %194 : vector<1x128xf32>
      %c6_i32_80 = arith.constant 6 : i32
      %196 = arith.addi %130, %c6_i32_80 : i32
      %c2_i32_81 = arith.constant 2 : i32
      %197 = arith.addi %196, %c2_i32_81 : i32
      %198 = arith.index_cast %197 : i32 to index
      %199 = memref.load %arg8[%198] : memref<18xf32, #tpu.memory_space<smem>>
      %200 = vector.broadcast %199 : f32 to vector<1x128xf32>
      %201 = arith.mulf %41, %200 : vector<1x128xf32>
      %202 = arith.addf %195, %201 : vector<1x128xf32>
      %c3_i32_82 = arith.constant 3 : i32
      %203 = arith.muli %arg0, %c3_i32_82 : i32
      %c2_i32_83 = arith.constant 2 : i32
      %204 = arith.addi %203, %c2_i32_83 : i32
      %205 = arith.index_cast %204 : i32 to index
      %206 = memref.load %arg9[%205] : memref<6xf32, #tpu.memory_space<smem>>
      %207 = vector.broadcast %206 : f32 to vector<1x128xf32>
      %208 = arith.addf %202, %207 : vector<1x128xf32>
      %c9_i32_84 = arith.constant 9 : i32
      %209 = arith.muli %arg0, %c9_i32_84 : i32
      %c0_i32_85 = arith.constant 0 : i32
      %210 = arith.addi %209, %c0_i32_85 : i32
      %c0_i32_86 = arith.constant 0 : i32
      %211 = arith.addi %210, %c0_i32_86 : i32
      %212 = arith.index_cast %211 : i32 to index
      %213 = memref.load %arg10[%212] : memref<18xf32, #tpu.memory_space<smem>>
      %214 = vector.broadcast %213 : f32 to vector<1x128xf32>
      %215 = arith.mulf %37, %214 : vector<1x128xf32>
      %c0_i32_87 = arith.constant 0 : i32
      %216 = arith.addi %209, %c0_i32_87 : i32
      %c1_i32_88 = arith.constant 1 : i32
      %217 = arith.addi %216, %c1_i32_88 : i32
      %218 = arith.index_cast %217 : i32 to index
      %219 = memref.load %arg10[%218] : memref<18xf32, #tpu.memory_space<smem>>
      %220 = vector.broadcast %219 : f32 to vector<1x128xf32>
      %221 = arith.mulf %39, %220 : vector<1x128xf32>
      %222 = arith.addf %215, %221 : vector<1x128xf32>
      %c0_i32_89 = arith.constant 0 : i32
      %223 = arith.addi %209, %c0_i32_89 : i32
      %c2_i32_90 = arith.constant 2 : i32
      %224 = arith.addi %223, %c2_i32_90 : i32
      %225 = arith.index_cast %224 : i32 to index
      %226 = memref.load %arg10[%225] : memref<18xf32, #tpu.memory_space<smem>>
      %227 = vector.broadcast %226 : f32 to vector<1x128xf32>
      %228 = arith.mulf %41, %227 : vector<1x128xf32>
      %229 = arith.addf %222, %228 : vector<1x128xf32>
      %c3_i32_91 = arith.constant 3 : i32
      %230 = arith.muli %arg0, %c3_i32_91 : i32
      %c0_i32_92 = arith.constant 0 : i32
      %231 = arith.addi %230, %c0_i32_92 : i32
      %232 = arith.index_cast %231 : i32 to index
      %233 = memref.load %arg11[%232] : memref<6xf32, #tpu.memory_space<smem>>
      %234 = vector.broadcast %233 : f32 to vector<1x128xf32>
      %235 = arith.addf %229, %234 : vector<1x128xf32>
      %c3_i32_93 = arith.constant 3 : i32
      %236 = arith.addi %209, %c3_i32_93 : i32
      %c0_i32_94 = arith.constant 0 : i32
      %237 = arith.addi %236, %c0_i32_94 : i32
      %238 = arith.index_cast %237 : i32 to index
      %239 = memref.load %arg10[%238] : memref<18xf32, #tpu.memory_space<smem>>
      %240 = vector.broadcast %239 : f32 to vector<1x128xf32>
      %241 = arith.mulf %37, %240 : vector<1x128xf32>
      %c3_i32_95 = arith.constant 3 : i32
      %242 = arith.addi %209, %c3_i32_95 : i32
      %c1_i32_96 = arith.constant 1 : i32
      %243 = arith.addi %242, %c1_i32_96 : i32
      %244 = arith.index_cast %243 : i32 to index
      %245 = memref.load %arg10[%244] : memref<18xf32, #tpu.memory_space<smem>>
      %246 = vector.broadcast %245 : f32 to vector<1x128xf32>
      %247 = arith.mulf %39, %246 : vector<1x128xf32>
      %248 = arith.addf %241, %247 : vector<1x128xf32>
      %c3_i32_97 = arith.constant 3 : i32
      %249 = arith.addi %209, %c3_i32_97 : i32
      %c2_i32_98 = arith.constant 2 : i32
      %250 = arith.addi %249, %c2_i32_98 : i32
      %251 = arith.index_cast %250 : i32 to index
      %252 = memref.load %arg10[%251] : memref<18xf32, #tpu.memory_space<smem>>
      %253 = vector.broadcast %252 : f32 to vector<1x128xf32>
      %254 = arith.mulf %41, %253 : vector<1x128xf32>
      %255 = arith.addf %248, %254 : vector<1x128xf32>
      %c3_i32_99 = arith.constant 3 : i32
      %256 = arith.muli %arg0, %c3_i32_99 : i32
      %c1_i32_100 = arith.constant 1 : i32
      %257 = arith.addi %256, %c1_i32_100 : i32
      %258 = arith.index_cast %257 : i32 to index
      %259 = memref.load %arg11[%258] : memref<6xf32, #tpu.memory_space<smem>>
      %260 = vector.broadcast %259 : f32 to vector<1x128xf32>
      %261 = arith.addf %255, %260 : vector<1x128xf32>
      %c6_i32_101 = arith.constant 6 : i32
      %262 = arith.addi %209, %c6_i32_101 : i32
      %c0_i32_102 = arith.constant 0 : i32
      %263 = arith.addi %262, %c0_i32_102 : i32
      %264 = arith.index_cast %263 : i32 to index
      %265 = memref.load %arg10[%264] : memref<18xf32, #tpu.memory_space<smem>>
      %266 = vector.broadcast %265 : f32 to vector<1x128xf32>
      %267 = arith.mulf %37, %266 : vector<1x128xf32>
      %c6_i32_103 = arith.constant 6 : i32
      %268 = arith.addi %209, %c6_i32_103 : i32
      %c1_i32_104 = arith.constant 1 : i32
      %269 = arith.addi %268, %c1_i32_104 : i32
      %270 = arith.index_cast %269 : i32 to index
      %271 = memref.load %arg10[%270] : memref<18xf32, #tpu.memory_space<smem>>
      %272 = vector.broadcast %271 : f32 to vector<1x128xf32>
      %273 = arith.mulf %39, %272 : vector<1x128xf32>
      %274 = arith.addf %267, %273 : vector<1x128xf32>
      %c6_i32_105 = arith.constant 6 : i32
      %275 = arith.addi %209, %c6_i32_105 : i32
      %c2_i32_106 = arith.constant 2 : i32
      %276 = arith.addi %275, %c2_i32_106 : i32
      %277 = arith.index_cast %276 : i32 to index
      %278 = memref.load %arg10[%277] : memref<18xf32, #tpu.memory_space<smem>>
      %279 = vector.broadcast %278 : f32 to vector<1x128xf32>
      %280 = arith.mulf %41, %279 : vector<1x128xf32>
      %281 = arith.addf %274, %280 : vector<1x128xf32>
      %c3_i32_107 = arith.constant 3 : i32
      %282 = arith.muli %arg0, %c3_i32_107 : i32
      %c2_i32_108 = arith.constant 2 : i32
      %283 = arith.addi %282, %c2_i32_108 : i32
      %284 = arith.index_cast %283 : i32 to index
      %285 = memref.load %arg11[%284] : memref<6xf32, #tpu.memory_space<smem>>
      %286 = vector.broadcast %285 : f32 to vector<1x128xf32>
      %287 = arith.addf %281, %286 : vector<1x128xf32>
      %288 = arith.subf %156, %77 : vector<1x128xf32>
      %289 = arith.mulf %288, %288 : vector<1x128xf32>
      %290 = arith.subf %182, %103 : vector<1x128xf32>
      %291 = arith.mulf %290, %290 : vector<1x128xf32>
      %292 = arith.addf %289, %291 : vector<1x128xf32>
      %293 = arith.subf %208, %129 : vector<1x128xf32>
      %294 = arith.mulf %293, %293 : vector<1x128xf32>
      %295 = arith.addf %292, %294 : vector<1x128xf32>
      %296 = math.sqrt %295 : vector<1x128xf32>
      %297 = arith.subf %235, %77 : vector<1x128xf32>
      %298 = arith.mulf %297, %297 : vector<1x128xf32>
      %299 = arith.subf %261, %103 : vector<1x128xf32>
      %300 = arith.mulf %299, %299 : vector<1x128xf32>
      %301 = arith.addf %298, %300 : vector<1x128xf32>
      %302 = arith.subf %287, %129 : vector<1x128xf32>
      %303 = arith.mulf %302, %302 : vector<1x128xf32>
      %304 = arith.addf %301, %303 : vector<1x128xf32>
      %305 = math.sqrt %304 : vector<1x128xf32>
      %306 = arith.mulf %296, %50 : vector<1x128xf32>
      %307 = vector.shape_cast %306 : vector<1x128xf32> to vector<1x1x128xf32>
      %cst_109 = arith.constant dense<0.000000e+00> : vector<1xf32>
      %308 = vector.multi_reduction <add>, %307, %cst_109 [1, 2] : vector<1x1x128xf32> to vector<1xf32>
      %309 = vector.shape_cast %308 : vector<1xf32> to vector<1x1x1xf32>
      %310 = vector.extract %309[0, 0, 0] : f32 from vector<1x1x1xf32>
      %cst_110 = arith.constant 1.562500e-02 : f32
      %311 = arith.mulf %310, %cst_110 : f32
      %312 = arith.mulf %305, %50 : vector<1x128xf32>
      %313 = vector.shape_cast %312 : vector<1x128xf32> to vector<1x1x128xf32>
      %cst_111 = arith.constant dense<0.000000e+00> : vector<1xf32>
      %314 = vector.multi_reduction <add>, %313, %cst_111 [1, 2] : vector<1x1x128xf32> to vector<1xf32>
      %315 = vector.shape_cast %314 : vector<1xf32> to vector<1x1x1xf32>
      %316 = vector.extract %315[0, 0, 0] : f32 from vector<1x1x1xf32>
      %cst_112 = arith.constant 1.562500e-02 : f32
      %317 = arith.mulf %316, %cst_112 : f32
      %318 = tpu.iota {dimensions = array<i32: 0>} : vector<3x128xi32>
      %c0_i32_113 = arith.constant 0 : i32
      %319 = vector.broadcast %c0_i32_113 : i32 to vector<3x128xi32>
      %320 = arith.cmpi eq, %318, %319 : vector<3x128xi32>
      %c1_i32_114 = arith.constant 1 : i32
      %321 = vector.broadcast %c1_i32_114 : i32 to vector<3x128xi32>
      %322 = arith.cmpi eq, %318, %321 : vector<3x128xi32>
      %323 = vector.broadcast %311 : f32 to vector<3x128xf32>
      %324 = vector.broadcast %317 : f32 to vector<3x128xf32>
      %325 = arith.select %322, %323, %324 : vector<3x128xi1>, vector<3x128xf32>
      %326 = vector.broadcast %35 : f32 to vector<3x128xf32>
      %327 = arith.select %320, %326, %325 : vector<3x128xi1>, vector<3x128xf32>
      %328 = vector.shape_cast %327 : vector<3x128xf32> to vector<1x3x128xf32>
      %c0_115 = arith.constant 0 : index
      %c0_116 = arith.constant 0 : index
      %c0_117 = arith.constant 0 : index
      %329 = vector.load %arg12[%c0_115, %c0_116, %c0_117] : memref<1x3x128xf32, #tpu.memory_space<vmem>>, vector<1x3x128xf32>
      tpu.vector_store %arg12[%c0_115, %c0_116, %c0_117], %328 {strides = array<i32>} : memref<1x3x128xf32, #tpu.memory_space<vmem>>, vector<1x3x128xf32>,
    } else {
    }
    return
  }
  func.func @transform_0(%arg0: i32, %arg1: i32) -> (i32, i32, i32, i32) {
    %c0_i32 = arith.constant 0 : i32
    %c0_i32_0 = arith.constant 0 : i32
    %c0_i32_1 = arith.constant 0 : i32
    return %arg0, %c0_i32, %arg1, %c0_i32_0 : i32, i32, i32, i32
  }
  func.func @transform_1(%arg0: i32, %arg1: i32) -> (i32, i32, i32, i32) {
    %c0_i32 = arith.constant 0 : i32
    %c0_i32_0 = arith.constant 0 : i32
    %c0_i32_1 = arith.constant 0 : i32
    return %arg0, %c0_i32, %arg1, %c0_i32_0 : i32, i32, i32, i32
  }
  func.func @transform_2(%arg0: i32, %arg1: i32) -> (i32, i32, i32, i32) {
    %c0_i32 = arith.constant 0 : i32
    %c0_i32_0 = arith.constant 0 : i32
    %c0_i32_1 = arith.constant 0 : i32
    return %arg0, %c0_i32, %arg1, %c0_i32_0 : i32, i32, i32, i32
  }
  func.func @transform_3(%arg0: i32, %arg1: i32) -> (i32, i32, i32, i32) {
    %c0_i32 = arith.constant 0 : i32
    %c0_i32_0 = arith.constant 0 : i32
    %c0_i32_1 = arith.constant 0 : i32
    %c0_i32_2 = arith.constant 0 : i32
    return %arg0, %c0_i32, %c0_i32_0, %c0_i32_1 : i32, i32, i32, i32
  }
  func.func @transform_4(%arg0: i32, %arg1: i32) -> i32 {
    %c0_i32 = arith.constant 0 : i32
    %c0_i32_0 = arith.constant 0 : i32
    return %c0_i32 : i32
  }
  func.func @transform_5(%arg0: i32, %arg1: i32) -> i32 {
    %c0_i32 = arith.constant 0 : i32
    %c0_i32_0 = arith.constant 0 : i32
    return %c0_i32 : i32
  }
  func.func @transform_6(%arg0: i32, %arg1: i32) -> i32 {
    %c0_i32 = arith.constant 0 : i32
    %c0_i32_0 = arith.constant 0 : i32
    return %c0_i32 : i32
  }
  func.func @transform_7(%arg0: i32, %arg1: i32) -> i32 {
    %c0_i32 = arith.constant 0 : i32
    %c0_i32_0 = arith.constant 0 : i32
    return %c0_i32 : i32
  }
  func.func @transform_8(%arg0: i32, %arg1: i32) -> i32 {
    %c0_i32 = arith.constant 0 : i32
    %c0_i32_0 = arith.constant 0 : i32
    return %c0_i32 : i32
  }
  func.func @transform_9(%arg0: i32, %arg1: i32) -> i32 {
    %c0_i32 = arith.constant 0 : i32
    %c0_i32_0 = arith.constant 0 : i32
    return %c0_i32 : i32
  }
  func.func @transform_10(%arg0: i32, %arg1: i32) -> (i32, i32, i32) {
    %c0_i32 = arith.constant 0 : i32
    %c0_i32_0 = arith.constant 0 : i32
    %c0_i32_1 = arith.constant 0 : i32
    return %arg0, %c0_i32, %c0_i32_0 : i32, i32, i32
  }
}

</mosaic_0001>

<llo_original>
// kernel: tpu_custom_call.1
$region0: #{tpu_custom_call.1}
  #allocation0 [shape = 'u32[]', space=smem, size = 0x4, offset = 0x4, fixed_abs, tag = 'smem constant byte address 0x4 - core index']
  #allocation1 [shape = 'u32[72,128]{1,0:T(1,128)}', space=vmem, size = 0x9000, scoped, tag = 'internal scratch']
  #allocation2 [shape = 'f32[2,128]{1,0:T(2,128)}', space=vmem, size = 0x400, scoped, tag = 'scratch operand']
  #allocation3 [shape = 'f32[2,128]{1,0:T(2,128)}', space=vmem, size = 0x400, scoped, tag = 'scratch operand']
  %s0 = inlined_call_operand.hbm [shape: f32[2,4,2,128], index: 0, kind: input, shape index: {}]
  %s1 = inlined_call_operand.hbm [shape: f32[2,4,2,128], index: 1, kind: input, shape index: {}]
  %s2 = inlined_call_operand.hbm [shape: f32[2,1,2,128], index: 2, kind: input, shape index: {}]
  %s3 = inlined_call_operand.hbm [shape: f32[2,3,1,128], index: 3, kind: input, shape index: {}]
  %s4 = inlined_call_operand.vmem [shape: f32[18], index: 4, kind: input, shape index: {}]
  %s5 = inlined_call_operand.vmem [shape: f32[6], index: 5, kind: input, shape index: {}]
  %s6 = inlined_call_operand.vmem [shape: f32[18], index: 6, kind: input, shape index: {}]
  %s7 = inlined_call_operand.vmem [shape: f32[6], index: 7, kind: input, shape index: {}]
  %s8 = inlined_call_operand.vmem [shape: f32[18], index: 8, kind: input, shape index: {}]
  %s9 = inlined_call_operand.vmem [shape: f32[6], index: 9, kind: input, shape index: {}]
  %s10 = inlined_call_operand.vmem [shape: f32[2,3,128], index: 10, kind: output, shape index: {}]
  %s11 = sld [smem:[#allocation0]]
  $region121: #{tpu_custom_call.1} parent=0
    _
  %s13 = ssub.s32 1, %s11
  %s14 = scalar_select 0, %s13, %s11
  $region1: #{tpu_custom_call.1} parent=0
    #allocation4 [shape = 'u8[8192]{0}', space=vmem, size = 0x2000, scoped, tag = 'input window, operand 0']
    #allocation5 [shape = 's32[2]{0}', space=sflag, size = 0x8, scoped, tag = 'scoped memory for tpu_custom_call.1']
    #allocation6 [shape = 's32[2]{0}', space=sflag, size = 0x8, scoped, tag = 'scoped memory for tpu_custom_call.1']
    #allocation7 [shape = 'u8[8192]{0}', space=vmem, size = 0x2000, scoped, tag = 'input window, operand 1']
    #allocation8 [shape = 's32[2]{0}', space=sflag, size = 0x8, scoped, tag = 'scoped memory for tpu_custom_call.1']
    #allocation9 [shape = 'u8[2048]{0}', space=vmem, size = 0x800, scoped, tag = 'input window, operand 2']
    #allocation10 [shape = 'u8[3072]{0}', space=vmem, size = 0xc00, scoped, tag = 'input window, operand 3']
    #allocation11 [shape = 's32[2]{0}', space=sflag, size = 0x8, scoped, tag = 'scoped memory for tpu_custom_call.1']
    #allocation12 [shape = 'u8[512]{0}', space=smem, size = 0x200, scoped, tag = 'input window, operand 4, single buffered']
    #allocation13 [shape = 'u8[512]{0}', space=smem, size = 0x200, scoped, tag = 'input window, operand 5, single buffered']
    #allocation14 [shape = 's32[1]{0}', space=sflag, size = 0x4, scoped, tag = 'scoped memory for tpu_custom_call.1']
    #allocation15 [shape = 'u8[512]{0}', space=smem, size = 0x200, scoped, tag = 'input window, operand 6, single buffered']
    #allocation16 [shape = 'u8[512]{0}', space=smem, size = 0x200, scoped, tag = 'input window, operand 7, single buffered']
    #allocation17 [shape = 's32[1]{0}', space=sflag, size = 0x4, scoped, tag = 'scoped memory for tpu_custom_call.1']
    #allocation18 [shape = 'u8[512]{0}', space=smem, size = 0x200, scoped, tag = 'input window, operand 8, single buffered']
    #allocation19 [shape = 'u8[512]{0}', space=smem, size = 0x200, scoped, tag = 'input window, operand 9, single buffered']
    #allocation20 [shape = 's32[1]{0}', space=sflag, size = 0x4, scoped, tag = 'scoped memory for tpu_custom_call.1']
    %15 = vsyncpa [#allocation5], 0
    %s16 = scalar_lea.sflag [#allocation5], 1
    %17 = vsyncpa %s16, 0
    %18 = vsyncpa [#allocation8], 0
    %s19 = scalar_lea.sflag [#allocation8], 1
    %20 = vsyncpa %s19, 0
    %21 = vsyncpa [#allocation11], 0
    %s22 = scalar_lea.sflag [#allocation11], 1
    %23 = vsyncpa %s22, 0
    %24 = vsyncpa [#allocation6], 0
    %25 = vsyncpa [#allocation14], 0
    %26 = vsyncpa [#allocation17], 0
    %27 = vsyncpa [#allocation20], 0
    loop: start=0, step=1, limit=4
    $region2: #{tpu_custom_call.1} parent=1 // loop_pre_header
      _
    $region3: #{tpu_custom_call.1} parent=1 // loop_header
      %s29 = sphi 0, %s33
      %p30 = scmp.ge.s32.totalorder %s29, 4
      %s36 = sphi 0, %s48
      %s37 = sphi 0, %s44
      %s38 = sphi 0, %s36
      %s39 = sphi 0, %s37
      %s40 = sphi 0, %s38
      %s41 = sphi 0, %s39
      %s53 = sphi 0, %s55
      %s56 = sphi 0, %s53
      %s57 = sphi 0, %s56
      %s73 = sphi 0, %s57
      %s81 = sphi 0, %s83
      %s84 = sphi 0, %s81
      %s85 = sphi 0, %s84
      %s101 = sphi 0, %s85
      %s109 = sphi 0, %s111
      %s112 = sphi 0, %s109
      %s113 = sphi 0, %s112
      %s129 = sphi 0, %s113
      %s135 = sphi 0, %s137
      %s138 = sphi 0, %s135
      %s139 = sphi 0, %s138
      %s155 = sphi 0, %s139
      %s159 = sphi 0, %s159
      %s161 = sphi 0, %s159
      %s162 = sphi 0, %s161
      %s176 = sphi 0, %s162
      %s180 = sphi 0, %s180
      %s182 = sphi 0, %s180
      %s183 = sphi 0, %s182
      %s197 = sphi 0, %s183
      %s201 = sphi 0, %s201
      %s203 = sphi 0, %s201
      %s204 = sphi 0, %s203
      %s218 = sphi 0, %s204
      %s222 = sphi 0, %s222
      %s224 = sphi 0, %s222
      %s225 = sphi 0, %s224
      %s239 = sphi 0, %s225
      %s243 = sphi 0, %s243
      %s245 = sphi 0, %s243
      %s246 = sphi 0, %s245
      %s260 = sphi 0, %s246
      %s264 = sphi 0, %s264
      %s266 = sphi 0, %s264
      %s267 = sphi 0, %s266
      %s281 = sphi 0, %s267
      %s287 = sphi 0, %s289
      %s290 = sphi 0, %s287
      %s291 = sphi 0, %s290
      %s307 = sphi 0, %s291
    $region4: #{tpu_custom_call.1} parent=1 // loop_header_branch
      %32 = sbr.rel (%p30) target = $region8
    $region5: #{tpu_custom_call.1} parent=1 // loop_body
      %s34 = ssub.s32 %s29, 1
      %s35 = ssub.s32 %s29, 2
      %s42 = sadd.s32 1, %s37
      %p43 = scmp.ge.s32.totalorder %s42, 1
      %s44 = scalar_select %p43, 0, %s42
      %s45 = sadd.s32 1, %s36
      %s46 = scalar_select %p43, %s45, %s36
      %p47 = scmp.ge.s32.totalorder %s46, 2
      %s48 = scalar_select %p47, 0, %s46
      %s49 = ssub.s32 %s36, %s48
      %s50 = ssub.s32 %s37, %s44
      %s51 = sor.u32 %s49, %s50
      %p52 = scmp.eq.s32.totalorder %s51, 0
      %s54 = sadd.s32 %s53, 1
      %s55 = scalar_select %p52, %s53, %s54
      %p58 = pneg %p52
      %p59 = scmp.eq.s32.totalorder %s29, 1
      %p60 = por %p58, %p59
      %p61 = scmp.ne.s32.totalorder %s53, %s56
      %p62 = scmp.eq.s32.totalorder %s29, 0
      %p63 = por %p61, %p62
      %p64 = scmp.ne.s32.totalorder %s53, %s56
      %p65 = scmp.eq.s32.totalorder %s34, 1
      %p66 = por %p64, %p65
      %p67 = scmp.ne.s32.totalorder %s56, %s57
      %p68 = scmp.eq.s32.totalorder %s34, 0
      %p69 = por %p67, %p68
      %p70 = scmp.ne.s32.totalorder %s56, %s57
      %p71 = scmp.eq.s32.totalorder %s35, 1
      %p72 = por %p70, %p71
      %p74 = scmp.ne.s32.totalorder %s57, %s73
      %p75 = scmp.eq.s32.totalorder %s35, 0
      %p76 = por %p74, %p75
      %s77 = ssub.s32 %s36, %s48
      %s78 = ssub.s32 %s37, %s44
      %s79 = sor.u32 %s77, %s78
      %p80 = scmp.eq.s32.totalorder %s79, 0
      %s82 = sadd.s32 %s81, 1
      %s83 = scalar_select %p80, %s81, %s82
      %p86 = pneg %p80
      %p87 = scmp.eq.s32.totalorder %s29, 1
      %p88 = por %p86, %p87
      %p89 = scmp.ne.s32.totalorder %s81, %s84
      %p90 = scmp.eq.s32.totalorder %s29, 0
      %p91 = por %p89, %p90
      %p92 = scmp.ne.s32.totalorder %s81, %s84
      %p93 = scmp.eq.s32.totalorder %s34, 1
      %p94 = por %p92, %p93
      %p95 = scmp.ne.s32.totalorder %s84, %s85
      %p96 = scmp.eq.s32.totalorder %s34, 0
      %p97 = por %p95, %p96
      %p98 = scmp.ne.s32.totalorder %s84, %s85
      %p99 = scmp.eq.s32.totalorder %s35, 1
      %p100 = por %p98, %p99
      %p102 = scmp.ne.s32.totalorder %s85, %s101
      %p103 = scmp.eq.s32.totalorder %s35, 0
      %p104 = por %p102, %p103
      %s105 = ssub.s32 %s36, %s48
      %s106 = ssub.s32 %s37, %s44
      %s107 = sor.u32 %s105, %s106
      %p108 = scmp.eq.s32.totalorder %s107, 0
      %s110 = sadd.s32 %s109, 1
      %s111 = scalar_select %p108, %s109, %s110
      %p114 = pneg %p108
      %p115 = scmp.eq.s32.totalorder %s29, 1
      %p116 = por %p114, %p115
      %p117 = scmp.ne.s32.totalorder %s109, %s112
      %p118 = scmp.eq.s32.totalorder %s29, 0
      %p119 = por %p117, %p118
      %p120 = scmp.ne.s32.totalorder %s109, %s112
      %p121 = scmp.eq.s32.totalorder %s34, 1
      %p122 = por %p120, %p121
      %p123 = scmp.ne.s32.totalorder %s112, %s113
      %p124 = scmp.eq.s32.totalorder %s34, 0
      %p125 = por %p123, %p124
      %p126 = scmp.ne.s32.totalorder %s112, %s113
      %p127 = scmp.eq.s32.totalorder %s35, 1
      %p128 = por %p126, %p127
      %p130 = scmp.ne.s32.totalorder %s113, %s129
      %p131 = scmp.eq.s32.totalorder %s35, 0
      %p132 = por %p130, %p131
      %s133 = ssub.s32 %s36, %s48
      %p134 = scmp.eq.s32.totalorder %s133, 0
      %s136 = sadd.s32 %s135, 1
      %s137 = scalar_select %p134, %s135, %s136
      %p140 = pneg %p134
      %p141 = scmp.eq.s32.totalorder %s29, 1
      %p142 = por %p140, %p141
      %p143 = scmp.ne.s32.totalorder %s135, %s138
      %p144 = scmp.eq.s32.totalorder %s29, 0
      %p145 = por %p143, %p144
      %p146 = scmp.ne.s32.totalorder %s135, %s138
      %p147 = scmp.eq.s32.totalorder %s34, 1
      %p148 = por %p146, %p147
      %p149 = scmp.ne.s32.totalorder %s138, %s139
      %p150 = scmp.eq.s32.totalorder %s34, 0
      %p151 = por %p149, %p150
      %p152 = scmp.ne.s32.totalorder %s138, %s139
      %p153 = scmp.eq.s32.totalorder %s35, 1
      %p154 = por %p152, %p153
      %p156 = scmp.ne.s32.totalorder %s139, %s155
      %p157 = scmp.eq.s32.totalorder %s35, 0
      %p158 = por %p156, %p157
      %s160 = sadd.s32 %s159, 1
      %p163 = scmp.eq.s32.totalorder %s29, 1
      %p164 = scmp.ne.s32.totalorder %s159, %s161
      %p165 = scmp.eq.s32.totalorder %s29, 0
      %p166 = por %p164, %p165
      %p167 = scmp.ne.s32.totalorder %s159, %s161
      %p168 = scmp.eq.s32.totalorder %s34, 1
      %p169 = por %p167, %p168
      %p170 = scmp.ne.s32.totalorder %s161, %s162
      %p171 = scmp.eq.s32.totalorder %s34, 0
      %p172 = por %p170, %p171
      %p173 = scmp.ne.s32.totalorder %s161, %s162
      %p174 = scmp.eq.s32.totalorder %s35, 1
      %p175 = por %p173, %p174
      %p177 = scmp.ne.s32.totalorder %s162, %s176
      %p178 = scmp.eq.s32.totalorder %s35, 0
      %p179 = por %p177, %p178
      %s181 = sadd.s32 %s180, 1
      %p184 = scmp.eq.s32.totalorder %s29, 1
      %p185 = scmp.ne.s32.totalorder %s180, %s182
      %p186 = scmp.eq.s32.totalorder %s29, 0
      %p187 = por %p185, %p186
      %p188 = scmp.ne.s32.totalorder %s180, %s182
      %p189 = scmp.eq.s32.totalorder %s34, 1
      %p190 = por %p188, %p189
      %p191 = scmp.ne.s32.totalorder %s182, %s183
      %p192 = scmp.eq.s32.totalorder %s34, 0
      %p193 = por %p191, %p192
      %p194 = scmp.ne.s32.totalorder %s182, %s183
      %p195 = scmp.eq.s32.totalorder %s35, 1
      %p196 = por %p194, %p195
      %p198 = scmp.ne.s32.totalorder %s183, %s197
      %p199 = scmp.eq.s32.totalorder %s35, 0
      %p200 = por %p198, %p199
      %s202 = sadd.s32 %s201, 1
      %p205 = scmp.eq.s32.totalorder %s29, 1
      %p206 = scmp.ne.s32.totalorder %s201, %s203
      %p207 = scmp.eq.s32.totalorder %s29, 0
      %p208 = por %p206, %p207
      %p209 = scmp.ne.s32.totalorder %s201, %s203
      %p210 = scmp.eq.s32.totalorder %s34, 1
      %p211 = por %p209, %p210
      %p212 = scmp.ne.s32.totalorder %s203, %s204
      %p213 = scmp.eq.s32.totalorder %s34, 0
      %p214 = por %p212, %p213
      %p215 = scmp.ne.s32.totalorder %s203, %s204
      %p216 = scmp.eq.s32.totalorder %s35, 1
      %p217 = por %p215, %p216
      %p219 = scmp.ne.s32.totalorder %s204, %s218
      %p220 = scmp.eq.s32.totalorder %s35, 0
      %p221 = por %p219, %p220
      %s223 = sadd.s32 %s222, 1
      %p226 = scmp.eq.s32.totalorder %s29, 1
      %p227 = scmp.ne.s32.totalorder %s222, %s224
      %p228 = scmp.eq.s32.totalorder %s29, 0
      %p229 = por %p227, %p228
      %p230 = scmp.ne.s32.totalorder %s222, %s224
      %p231 = scmp.eq.s32.totalorder %s34, 1
      %p232 = por %p230, %p231
      %p233 = scmp.ne.s32.totalorder %s224, %s225
      %p234 = scmp.eq.s32.totalorder %s34, 0
      %p235 = por %p233, %p234
      %p236 = scmp.ne.s32.totalorder %s224, %s225
      %p237 = scmp.eq.s32.totalorder %s35, 1
      %p238 = por %p236, %p237
      %p240 = scmp.ne.s32.totalorder %s225, %s239
      %p241 = scmp.eq.s32.totalorder %s35, 0
      %p242 = por %p240, %p241
      %s244 = sadd.s32 %s243, 1
      %p247 = scmp.eq.s32.totalorder %s29, 1
      %p248 = scmp.ne.s32.totalorder %s243, %s245
      %p249 = scmp.eq.s32.totalorder %s29, 0
      %p250 = por %p248, %p249
      %p251 = scmp.ne.s32.totalorder %s243, %s245
      %p252 = scmp.eq.s32.totalorder %s34, 1
      %p253 = por %p251, %p252
      %p254 = scmp.ne.s32.totalorder %s245, %s246
      %p255 = scmp.eq.s32.totalorder %s34, 0
      %p256 = por %p254, %p255
      %p257 = scmp.ne.s32.totalorder %s245, %s246
      %p258 = scmp.eq.s32.totalorder %s35, 1
      %p259 = por %p257, %p258
      %p261 = scmp.ne.s32.totalorder %s246, %s260
      %p262 = scmp.eq.s32.totalorder %s35, 0
      %p263 = por %p261, %p262
      %s265 = sadd.s32 %s264, 1
      %p268 = scmp.eq.s32.totalorder %s29, 1
      %p269 = scmp.ne.s32.totalorder %s264, %s266
      %p270 = scmp.eq.s32.totalorder %s29, 0
      %p271 = por %p269, %p270
      %p272 = scmp.ne.s32.totalorder %s264, %s266
      %p273 = scmp.eq.s32.totalorder %s34, 1
      %p274 = por %p272, %p273
      %p275 = scmp.ne.s32.totalorder %s266, %s267
      %p276 = scmp.eq.s32.totalorder %s34, 0
      %p277 = por %p275, %p276
      %p278 = scmp.ne.s32.totalorder %s266, %s267
      %p279 = scmp.eq.s32.totalorder %s35, 1
      %p280 = por %p278, %p279
      %p282 = scmp.ne.s32.totalorder %s267, %s281
      %p283 = scmp.eq.s32.totalorder %s35, 0
      %p284 = por %p282, %p283
      %s285 = ssub.s32 %s36, %s48
      %p286 = scmp.eq.s32.totalorder %s285, 0
      %s288 = sadd.s32 %s287, 1
      %s289 = scalar_select %p286, %s287, %s288
      %p292 = pneg %p286
      %p293 = scmp.eq.s32.totalorder %s29, 1
      %p294 = por %p292, %p293
      %p295 = scmp.ne.s32.totalorder %s287, %s290
      %p296 = scmp.eq.s32.totalorder %s29, 0
      %p297 = por %p295, %p296
      %p298 = scmp.ne.s32.totalorder %s287, %s290
      %p299 = scmp.eq.s32.totalorder %s34, 1
      %p300 = por %p298, %p299
      %p301 = scmp.ne.s32.totalorder %s290, %s291
      %p302 = scmp.eq.s32.totalorder %s34, 0
      %p303 = por %p301, %p302
      %p304 = scmp.ne.s32.totalorder %s290, %s291
      %p305 = scmp.eq.s32.totalorder %s35, 1
      %p306 = por %p304, %p305
      %p308 = scmp.ne.s32.totalorder %s291, %s307
      %p309 = scmp.eq.s32.totalorder %s35, 0
      %p310 = por %p308, %p309
      %p311 = scmp.le.s32.totalorder 1, %s29
      %p312 = scmp.lt.s32.totalorder %s29, 3
      %p313 = pnand %p311, %p312
      %p314 = pneg %p313
      // Predicated region
      $region9: #{tpu_custom_call.1} parent=5 // pred_check
        _
      $region10: #{tpu_custom_call.1} parent=5 // pred_check_branch
        %316 = sbr.rel (%p313) target = $region12
      $region11: #{tpu_custom_call.1} parent=5 // pred_region
        %s317 = ssub.s32 %s29, 1
        // Predicated region
        $region13: #{tpu_custom_call.1} parent=11 // pred_check
          %p318 = pneg %p172
        $region14: #{tpu_custom_call.1} parent=11 // pred_check_branch
          %320 = sbr.rel (%p318) target = $region16
        $region15: #{tpu_custom_call.1} parent=11 // pred_region
          %322 = vsyncadd [#allocation6], 0
          %s324 = sshll.u32 %s4, 4
          %s325 = int_to_ptr.vmem [resolvable:$true] %s324
          %327 = dma.vmem_to_smem %s325, 16, [#allocation12], [#allocation6]
        $region16: #{tpu_custom_call.1} parent=11 // pred_fallthru
          _
        // Predicated region
        $region17: #{tpu_custom_call.1} parent=11 // pred_check
          %p328 = pneg %p193
        $region18: #{tpu_custom_call.1} parent=11 // pred_check_branch
          %330 = sbr.rel (%p328) target = $region20
        $region19: #{tpu_custom_call.1} parent=11 // pred_region
          %332 = vsyncadd [#allocation14], 0
          %s334 = sshll.u32 %s5, 4
          %s335 = int_to_ptr.vmem [resolvable:$true] %s334
          %337 = dma.vmem_to_smem %s335, 16, [#allocation13], [#allocation14]
        $region20: #{tpu_custom_call.1} parent=11 // pred_fallthru
          _
        // Predicated region
        $region21: #{tpu_custom_call.1} parent=11 // pred_check
          %p338 = pneg %p214
        $region22: #{tpu_custom_call.1} parent=11 // pred_check_branch
          %340 = sbr.rel (%p338) target = $region24
        $region23: #{tpu_custom_call.1} parent=11 // pred_region
          %342 = vsyncadd [#allocation14], 0
          %s344 = sshll.u32 %s6, 4
          %s345 = int_to_ptr.vmem [resolvable:$true] %s344
          %347 = dma.vmem_to_smem %s345, 16, [#allocation15], [#allocation14]
        $region24: #{tpu_custom_call.1} parent=11 // pred_fallthru
          _
        // Predicated region
        $region25: #{tpu_custom_call.1} parent=11 // pred_check
          %p348 = pneg %p235
        $region26: #{tpu_custom_call.1} parent=11 // pred_check_branch
          %350 = sbr.rel (%p348) target = $region28
        $region27: #{tpu_custom_call.1} parent=11 // pred_region
          %352 = vsyncadd [#allocation17], 0
          %s354 = sshll.u32 %s7, 4
          %s355 = int_to_ptr.vmem [resolvable:$true] %s354
          %357 = dma.vmem_to_smem %s355, 16, [#allocation16], [#allocation17]
        $region28: #{tpu_custom_call.1} parent=11 // pred_fallthru
          _
        // Predicated region
        $region29: #{tpu_custom_call.1} parent=11 // pred_check
          %p358 = pneg %p256
        $region30: #{tpu_custom_call.1} parent=11 // pred_check_branch
          %360 = sbr.rel (%p358) target = $region32
        $region31: #{tpu_custom_call.1} parent=11 // pred_region
          %362 = vsyncadd [#allocation17], 0
          %s364 = sshll.u32 %s8, 4
          %s365 = int_to_ptr.vmem [resolvable:$true] %s364
          %367 = dma.vmem_to_smem %s365, 16, [#allocation18], [#allocation17]
        $region32: #{tpu_custom_call.1} parent=11 // pred_fallthru
          _
        // Predicated region
        $region33: #{tpu_custom_call.1} parent=11 // pred_check
          %p368 = pneg %p277
        $region34: #{tpu_custom_call.1} parent=11 // pred_check_branch
          %370 = sbr.rel (%p368) target = $region36
        $region35: #{tpu_custom_call.1} parent=11 // pred_region
          %372 = vsyncadd [#allocation20], 0
          %s374 = sshll.u32 %s9, 4
          %s375 = int_to_ptr.vmem [resolvable:$true] %s374
          %377 = dma.vmem_to_smem %s375, 16, [#allocation19], [#allocation20]
        $region36: #{tpu_custom_call.1} parent=11 // pred_fallthru
          _
      $region12: #{tpu_custom_call.1} parent=5 // pred_fallthru
        _
      %p378 = scmp.lt.s32.totalorder %s29, 2
      // Predicated region
      $region37: #{tpu_custom_call.1} parent=5 // pred_check
        %p379 = pneg %p378
      $region38: #{tpu_custom_call.1} parent=5 // pred_check_branch
        %381 = sbr.rel (%p379) target = $region40
      $region39: #{tpu_custom_call.1} parent=5 // pred_region
        // Predicated region
        $region41: #{tpu_custom_call.1} parent=39 // pred_check
          %p382 = pneg %p63
        $region42: #{tpu_custom_call.1} parent=39 // pred_check_branch
          %384 = sbr.rel (%p382) target = $region44
        $region43: #{tpu_custom_call.1} parent=39 // pred_region
          %s385 = sand.u32 %s53, 1
          %s386 = scalar_lea.sflag [#allocation5], %s385
          %s387 = sand.u32 %s53, 1
          %s388 = smul.addr %s387, 8
          %s389 = scalar_lea.vmem [#allocation4], %s388
          %391 = vsyncadd %s386, 0
          %s392 = smul.addr %s36, 4
          %s393 = sadd.s32 %s37, %s392
          %s394 = smul.addr %s393, 2
          %s395 = scalar_lea.hbm %s0, %s394
          %s396 = sshll.u32 %s395, 4
          %s397 = int_to_ptr.hbm [resolvable:$true] %s396
          %s398 = sshll.u32 %s389, 4
          %s399 = int_to_ptr.vmem [resolvable:$true] %s398
          %404 = dma.hbm_to_vmem [thread:$0]  %s397, 128, %s399, %s386, 32, 32, 2
        $region44: #{tpu_custom_call.1} parent=39 // pred_fallthru
          _
        // Predicated region
        $region45: #{tpu_custom_call.1} parent=39 // pred_check
          %p405 = pneg %p91
        $region46: #{tpu_custom_call.1} parent=39 // pred_check_branch
          %407 = sbr.rel (%p405) target = $region48
        $region47: #{tpu_custom_call.1} parent=39 // pred_region
          %s408 = sand.u32 %s29, 1
          %s409 = scalar_lea.sflag [#allocation8], %s408
          %s410 = sand.u32 %s81, 1
          %s411 = smul.addr %s410, 8
          %s412 = scalar_lea.vmem [#allocation7], %s411
          %414 = vsyncadd %s409, 0
          %s415 = smul.addr %s36, 4
          %s416 = sadd.s32 %s37, %s415
          %s417 = smul.addr %s416, 2
          %s418 = scalar_lea.hbm %s1, %s417
          %s419 = sshll.u32 %s418, 4
          %s420 = int_to_ptr.hbm [resolvable:$true] %s419
          %s421 = sshll.u32 %s412, 4
          %s422 = int_to_ptr.vmem [resolvable:$true] %s421
          %427 = dma.hbm_to_vmem [thread:$0]  %s420, 128, %s422, %s409, 32, 32, 2
        $region48: #{tpu_custom_call.1} parent=39 // pred_fallthru
          _
        // Predicated region
        $region49: #{tpu_custom_call.1} parent=39 // pred_check
          %p428 = pneg %p119
        $region50: #{tpu_custom_call.1} parent=39 // pred_check_branch
          %430 = sbr.rel (%p428) target = $region52
        $region51: #{tpu_custom_call.1} parent=39 // pred_region
          %s431 = sand.u32 %s29, 1
          %s432 = scalar_lea.sflag [#allocation8], %s431
          %s433 = sand.u32 %s109, 1
          %s434 = smul.addr %s433, 2
          %s435 = scalar_lea.vmem [#allocation9], %s434
          %437 = vsyncadd %s432, 0
          %s438 = sadd.s32 %s37, %s36
          %s439 = smul.addr %s438, 2
          %s440 = scalar_lea.hbm %s2, %s439
          %s442 = sshll.u32 %s440, 4
          %s443 = int_to_ptr.hbm [resolvable:$true] %s442
          %s444 = sshll.u32 %s435, 4
          %s445 = int_to_ptr.vmem [resolvable:$true] %s444
          %447 = dma.hbm_to_vmem [thread:$0]  %s443, 32, %s445, %s432
        $region52: #{tpu_custom_call.1} parent=39 // pred_fallthru
          _
        // Predicated region
        $region53: #{tpu_custom_call.1} parent=39 // pred_check
          %p448 = pneg %p145
        $region54: #{tpu_custom_call.1} parent=39 // pred_check_branch
          %450 = sbr.rel (%p448) target = $region56
        $region55: #{tpu_custom_call.1} parent=39 // pred_region
          %s451 = sand.u32 %s135, 1
          %s452 = scalar_lea.sflag [#allocation11], %s451
          %s453 = sand.u32 %s135, 1
          %s454 = smul.addr %s453, 3
          %s455 = scalar_lea.vmem [#allocation10], %s454
          %457 = vsyncadd %s452, 0
          %s458 = smul.addr %s36, 3
          %s459 = scalar_lea.hbm %s3, %s458
          %s460 = sshll.u32 %s459, 4
          %s461 = int_to_ptr.hbm [resolvable:$true] %s460
          %s462 = sshll.u32 %s455, 4
          %s463 = int_to_ptr.vmem [resolvable:$true] %s462
          %468 = dma.hbm_to_vmem [thread:$0]  %s461, 48, %s463, %s452, 16, 16, 1
        $region56: #{tpu_custom_call.1} parent=39 // pred_fallthru
          _
      $region40: #{tpu_custom_call.1} parent=5 // pred_fallthru
        _
      %p469 = scmp.le.s32.totalorder 1, %s29
      %p470 = scmp.lt.s32.totalorder %s29, 3
      %p471 = pnand %p469, %p470
      %p472 = pneg %p471
      // Predicated region
      $region57: #{tpu_custom_call.1} parent=5 // pred_check
        _
      $region58: #{tpu_custom_call.1} parent=5 // pred_check_branch
        %474 = sbr.rel (%p471) target = $region60
      $region59: #{tpu_custom_call.1} parent=5 // pred_region
        %s475 = ssub.s32 %s29, 1
        %s476 = sand.u32 %s56, 1
        %s477 = scalar_lea.sflag [#allocation5], %s476
        %s478 = sand.u32 %s56, 1
        %s479 = smul.addr %s478, 8
        %s480 = scalar_lea.vmem [#allocation4], %s479
        // Predicated region
        $region61: #{tpu_custom_call.1} parent=59 // pred_check
          %p481 = pneg %p69
        $region62: #{tpu_custom_call.1} parent=59 // pred_check_branch
          %483 = sbr.rel (%p481) target = $region64
        $region63: #{tpu_custom_call.1} parent=59 // pred_region
          %485 = dma.done %s477, 128
        $region64: #{tpu_custom_call.1} parent=59 // pred_fallthru
          _
        %s486 = sand.u32 %s34, 1
        %s487 = scalar_lea.sflag [#allocation8], %s486
        %s488 = sand.u32 %s84, 1
        %s489 = smul.addr %s488, 8
        %s490 = scalar_lea.vmem [#allocation7], %s489
        // Predicated region
        $region65: #{tpu_custom_call.1} parent=59 // pred_check
          %p491 = pneg %p97
        $region66: #{tpu_custom_call.1} parent=59 // pred_check_branch
          %493 = sbr.rel (%p491) target = $region68
        $region67: #{tpu_custom_call.1} parent=59 // pred_region
          %495 = dma.done %s487, 128
        $region68: #{tpu_custom_call.1} parent=59 // pred_fallthru
          _
        %s496 = sand.u32 %s34, 1
        %s497 = scalar_lea.sflag [#allocation8], %s496
        %s498 = sand.u32 %s112, 1
        %s499 = smul.addr %s498, 2
        %s500 = scalar_lea.vmem [#allocation9], %s499
        // Predicated region
        $region69: #{tpu_custom_call.1} parent=59 // pred_check
          %p501 = pneg %p125
        $region70: #{tpu_custom_call.1} parent=59 // pred_check_branch
          %503 = sbr.rel (%p501) target = $region72
        $region71: #{tpu_custom_call.1} parent=59 // pred_region
          %505 = dma.done %s497, 32
        $region72: #{tpu_custom_call.1} parent=59 // pred_fallthru
          _
        %s506 = sand.u32 %s138, 1
        %s507 = scalar_lea.sflag [#allocation11], %s506
        %s508 = sand.u32 %s138, 1
        %s509 = smul.addr %s508, 3
        %s510 = scalar_lea.vmem [#allocation10], %s509
        // Predicated region
        $region73: #{tpu_custom_call.1} parent=59 // pred_check
          %p511 = pneg %p151
        $region74: #{tpu_custom_call.1} parent=59 // pred_check_branch
          %513 = sbr.rel (%p511) target = $region76
        $region75: #{tpu_custom_call.1} parent=59 // pred_region
          %515 = dma.done %s507, 48
        $region76: #{tpu_custom_call.1} parent=59 // pred_fallthru
          _
        // Predicated region
        $region77: #{tpu_custom_call.1} parent=59 // pred_check
          %p516 = pneg %p172
        $region78: #{tpu_custom_call.1} parent=59 // pred_check_branch
          %518 = sbr.rel (%p516) target = $region80
        $region79: #{tpu_custom_call.1} parent=59 // pred_region
          %520 = dma.done [#allocation6], 16
        $region80: #{tpu_custom_call.1} parent=59 // pred_fallthru
          _
        // Predicated region
        $region81: #{tpu_custom_call.1} parent=59 // pred_check
          %p521 = pneg %p193
        $region82: #{tpu_custom_call.1} parent=59 // pred_check_branch
          %523 = sbr.rel (%p521) target = $region84
        $region83: #{tpu_custom_call.1} parent=59 // pred_region
          %525 = dma.done [#allocation14], 16
        $region84: #{tpu_custom_call.1} parent=59 // pred_fallthru
          _
        // Predicated region
        $region85: #{tpu_custom_call.1} parent=59 // pred_check
          %p526 = pneg %p214
        $region86: #{tpu_custom_call.1} parent=59 // pred_check_branch
          %528 = sbr.rel (%p526) target = $region88
        $region87: #{tpu_custom_call.1} parent=59 // pred_region
          %530 = dma.done [#allocation14], 16
        $region88: #{tpu_custom_call.1} parent=59 // pred_fallthru
          _
        // Predicated region
        $region89: #{tpu_custom_call.1} parent=59 // pred_check
          %p531 = pneg %p235
        $region90: #{tpu_custom_call.1} parent=59 // pred_check_branch
          %533 = sbr.rel (%p531) target = $region92
        $region91: #{tpu_custom_call.1} parent=59 // pred_region
          %535 = dma.done [#allocation17], 16
        $region92: #{tpu_custom_call.1} parent=59 // pred_fallthru
          _
        // Predicated region
        $region93: #{tpu_custom_call.1} parent=59 // pred_check
          %p536 = pneg %p256
        $region94: #{tpu_custom_call.1} parent=59 // pred_check_branch
          %538 = sbr.rel (%p536) target = $region96
        $region95: #{tpu_custom_call.1} parent=59 // pred_region
          %540 = dma.done [#allocation17], 16
        $region96: #{tpu_custom_call.1} parent=59 // pred_fallthru
          _
        // Predicated region
        $region97: #{tpu_custom_call.1} parent=59 // pred_check
          %p541 = pneg %p277
        $region98: #{tpu_custom_call.1} parent=59 // pred_check_branch
          %543 = sbr.rel (%p541) target = $region100
        $region99: #{tpu_custom_call.1} parent=59 // pred_region
          %545 = dma.done [#allocation20], 16
        $region100: #{tpu_custom_call.1} parent=59 // pred_fallthru
          _
        %546 = sfence
        %s547 = sand.u32 %s56, 1
        %s548 = scalar_lea.sflag [#allocation5], %s547
        %s549 = sand.u32 %s56, 1
        %s550 = smul.addr %s549, 8
        %s551 = scalar_lea.vmem [#allocation4], %s550
        %p552 = pneg %p69
        %p553 = pneg %p66
        %s554 = sand.u32 %s34, 1
        %s555 = scalar_lea.sflag [#allocation8], %s554
        %s556 = sand.u32 %s84, 1
        %s557 = smul.addr %s556, 8
        %s558 = scalar_lea.vmem [#allocation7], %s557
        %p559 = pneg %p97
        %p560 = pneg %p94
        %s561 = sand.u32 %s34, 1
        %s562 = scalar_lea.sflag [#allocation8], %s561
        %s563 = sand.u32 %s112, 1
        %s564 = smul.addr %s563, 2
        %s565 = scalar_lea.vmem [#allocation9], %s564
        %p566 = pneg %p125
        %p567 = pneg %p122
        %s568 = sand.u32 %s138, 1
        %s569 = scalar_lea.sflag [#allocation11], %s568
        %s570 = sand.u32 %s138, 1
        %s571 = smul.addr %s570, 3
        %s572 = scalar_lea.vmem [#allocation10], %s571
        %p573 = pneg %p151
        %p574 = pneg %p148
        %p575 = pneg %p172
        %p576 = pneg %p169
        %p577 = pneg %p193
        %p578 = pneg %p190
        %p579 = pneg %p214
        %p580 = pneg %p211
        %p581 = pneg %p235
        %p582 = pneg %p232
        %p583 = pneg %p256
        %p584 = pneg %p253
        %p585 = pneg %p277
        %p586 = pneg %p274
        %p587 = pneg %p303
        %p588 = pneg %p300
        %p589 = scmp.lt.s32.totalorder %s38, 1
        %s590 = scalar_select %p589, %s38, 1
        %s591 = smul.addr %s590, 4
        %s592 = scalar_lea.vmem %s10, %s591
        %p593 = scmp.lt.s32.totalorder %s38, 1
        %s594 = scalar_select %p593, %s38, 1
        %s595 = smul.addr %s594, 4
        %s596 = scalar_lea.vmem %s10, %s595
        %p597 = scmp.eq.s32.totalorder %s39, 0
        // Predicated region
        $region101: #{tpu_custom_call.1} parent=59 // pred_check
          %p598 = pneg %p597
        $region102: #{tpu_custom_call.1} parent=59 // pred_check_branch
          %600 = sbr.rel (%p598) target = $region104
        $region103: #{tpu_custom_call.1} parent=59 // pred_region
          %601 = vst [vmem:[#allocation2] sm:$0x3] 0.0
          %602 = vst [vmem:[#allocation3] sm:$0x3] 0.0
        $region104: #{tpu_custom_call.1} parent=59 // pred_fallthru
          _
        %v603 = vld [vmem:[%s500] sm:$0x3]
        %v604 = vld [vmem:[%s480] sm:$0x3]
        %v605 = vld [vmem:[%s480 + $0x2] sm:$0x3]
        %v606 = vld [vmem:[%s480 + $0x4] sm:$0x3]
        %v607 = vld [vmem:[%s480 + $0x6] sm:$0x3]
        %v608 = vld [vmem:[%s490] sm:$0x3]
        %v609 = vld [vmem:[%s490 + $0x2] sm:$0x3]
        %v610 = vld [vmem:[%s490 + $0x4] sm:$0x3]
        %v611 = vld [vmem:[%s490 + $0x6] sm:$0x3]
        %v612 = vsub.f32 %v604, %v608
        %v613 = vsub.f32 %v605, %v609
        %v614 = vsub.f32 %v606, %v610
        %v615 = vsub.f32 %v607, %v611
        %v616 = vmul.f32 %v612, %v603
        %v617 = vmul.f32 %v613, %v603
        %v618 = vmul.f32 %v614, %v603
        %v619 = vmul.f32 %v615, %v603
        %v620 = vmul.f32 %v616, %v616
        %v621 = vmul.f32 %v617, %v617
        %v622 = vmul.f32 %v618, %v618
        %v623 = vmul.f32 %v619, %v619
        %vm624 = vcmask 1041408
        %v625 = vsel %vm624, %v620, 0.0
        %v626 = vsel %vm624, %v621, 0.0
        %v627 = vadd.f32 %v625, %v626
        %v628 = vsel %vm624, %v622, 0.0
        %v629 = vadd.f32 %v627, %v628
        %v630 = vsel %vm624, %v623, 0.0
        %v631 = vadd.f32 %v629, %v630
        %v632 = vld [vmem:[#allocation2] sm:$0x3]
        %v633 = vadd.f32 %v632, %v631
        %634 = vst [vmem:[#allocation2] sm:$0x3] %v633
        %v635 = vld [vmem:[#allocation3] sm:$0x3]
        %v636 = vadd.f32 %v635, %v603
        %637 = vst [vmem:[#allocation3] sm:$0x3] %v636
        // Predicated region
        $region105: #{tpu_custom_call.1} parent=59 // pred_check
          %p638 = pneg %p597
        $region106: #{tpu_custom_call.1} parent=59 // pred_check_branch
          %640 = sbr.rel (%p638) target = $region108
        $region107: #{tpu_custom_call.1} parent=59 // pred_region
          %v641 = vld [vmem:[#allocation2] sm:$0x3]
          %v642 = vsel %vm624, %v641, 0.0
          %643 = vadd.xlane.f32.xlu0 %v642
          %v644 = vpop.xlane.xlu0 %643
          %v645 = vrot.slane %v644, 4
          %v646 = vadd.f32 %v644, %v645
          %v647 = vrot.slane %v646, 2
          %v648 = vadd.f32 %v646, %v647
          %v649 = vrot.slane %v648, 1
          %v650 = vadd.f32 %v648, %v649
          %s651 = vtos %v650
          %v652 = vld [vmem:[#allocation3] sm:$0x3]
          %v653 = vsel %vm624, %v652, 0.0
          %654 = vadd.xlane.f32.xlu0 %v653
          %v655 = vpop.xlane.xlu0 %654
          %v656 = vrot.slane %v655, 4
          %v657 = vadd.f32 %v655, %v656
          %v658 = vrot.slane %v657, 2
          %v659 = vadd.f32 %v657, %v658
          %v660 = vrot.slane %v659, 1
          %v661 = vadd.f32 %v659, %v660
          %s662 = vtos %v661
          %s663 = sadd.f32 %s662, 1e-10
          %v664 = vstv %s663
          %v665 = vrcp.pop %v664
          %v666 = vmul.f32 %v664, %v665
          %v667 = vsub.f32 1.0, %v666
          %v668 = vmul.f32 %v665, %v667
          %v669 = vadd.f32 %v665, %v668
          %vm670 = vweird.f32 %v664
          %vm671 = vweird.f32 %v665
          %vm672 = vmor %vm670, %vm671
          %v673 = vsel %vm672, %v665, %v669
          %v674 = vand.u32 2147483647, %v664
          %vm675 = vcmp.eq.f32.partialorder %v674, 8.507059e+37
          %v676 = vand.u32 %v664, 2147483648
          %v677 = vor.u32 1.1754944e-38, %v676
          %v678 = vsel %vm675, %v677, %v673
          %s679 = vtos %v678
          %s680 = smul.f32 %s651, %s679
          %v681 = vld [vmem:[%s510] sm:$0x1]
          %s682 = scalar_lea.vmem %s510, 1 [#allocation10]
          %v683 = vld [vmem:[%s682] sm:$0x1]
          %s684 = scalar_lea.vmem %s510, 2 [#allocation10]
          %v685 = vld [vmem:[%s684] sm:$0x1]
          %v686 = vlaneseq
          %v687 = vshrl.u32 %v686, 7
          %v688 = vmul.u32 %v687, 128
          %v689 = vlaneseq
          %v690 = vand.u32 %v689, 127
          %v691 = vadd.s32 %v688, %v690
          %vm692 = vcmp.lt.s32.totalorder %v691, 64
          %v693 = vsel %vm692, 1, 0
          %v694 = vcvt.s32.f32 %v693
          %s695 = smul.u32 %s38, 9
          %s696 = sld [smem:[#allocation12 + %s695]]
          %v697 = vstv %s696
          %v698 = vmul.f32 %v681, %v697
          %s699 = sadd.s32 %s695, 1
          %s700 = sld [smem:[#allocation12 + %s699]]
          %v701 = vstv %s700
          %v702 = vmul.f32 %v683, %v701
          %v703 = vadd.f32 %v698, %v702
          %s704 = sadd.s32 %s695, 2
          %s705 = sld [smem:[#allocation12 + %s704]]
          %v706 = vstv %s705
          %v707 = vmul.f32 %v685, %v706
          %v708 = vadd.f32 %v703, %v707
          %s709 = smul.u32 %s38, 3
          %s710 = sld [smem:[#allocation13 + %s709]]
          %v711 = vstv %s710
          %v712 = vadd.f32 %v708, %v711
          %s713 = sadd.s32 %s695, 3
          %s714 = sld [smem:[#allocation12 + %s713]]
          %v715 = vstv %s714
          %v716 = vmul.f32 %v681, %v715
          %s717 = sadd.s32 %s695, 4
          %s718 = sld [smem:[#allocation12 + %s717]]
          %v719 = vstv %s718
          %v720 = vmul.f32 %v683, %v719
          %v721 = vadd.f32 %v716, %v720
          %s722 = sadd.s32 %s695, 5
          %s723 = sld [smem:[#allocation12 + %s722]]
          %v724 = vstv %s723
          %v725 = vmul.f32 %v685, %v724
          %v726 = vadd.f32 %v721, %v725
          %s727 = sadd.s32 %s709, 1
          %s728 = sld [smem:[#allocation13 + %s727]]
          %v729 = vstv %s728
          %v730 = vadd.f32 %v726, %v729
          %s731 = sadd.s32 %s695, 6
          %s732 = sld [smem:[#allocation12 + %s731]]
          %v733 = vstv %s732
          %v734 = vmul.f32 %v681, %v733
          %s735 = sadd.s32 %s695, 7
          %s736 = sld [smem:[#allocation12 + %s735]]
          %v737 = vstv %s736
          %v738 = vmul.f32 %v683, %v737
          %v739 = vadd.f32 %v734, %v738
          %s740 = sadd.s32 %s695, 8
          %s741 = sld [smem:[#allocation12 + %s740]]
          %v742 = vstv %s741
          %v743 = vmul.f32 %v685, %v742
          %v744 = vadd.f32 %v739, %v743
          %s745 = sadd.s32 %s709, 2
          %s746 = sld [smem:[#allocation13 + %s745]]
          %v747 = vstv %s746
          %v748 = vadd.f32 %v744, %v747
          %s749 = sld [smem:[#allocation15 + %s695]]
          %v750 = vstv %s749
          %v751 = vmul.f32 %v681, %v750
          %s752 = sld [smem:[#allocation15 + %s699]]
          %v753 = vstv %s752
          %v754 = vmul.f32 %v683, %v753
          %v755 = vadd.f32 %v751, %v754
          %s756 = sld [smem:[#allocation15 + %s704]]
          %v757 = vstv %s756
          %v758 = vmul.f32 %v685, %v757
          %v759 = vadd.f32 %v755, %v758
          %s760 = sld [smem:[#allocation16 + %s709]]
          %v761 = vstv %s760
          %v762 = vadd.f32 %v759, %v761
          %s763 = sld [smem:[#allocation15 + %s713]]
          %v764 = vstv %s763
          %v765 = vmul.f32 %v681, %v764
          %s766 = sld [smem:[#allocation15 + %s717]]
          %v767 = vstv %s766
          %v768 = vmul.f32 %v683, %v767
          %v769 = vadd.f32 %v765, %v768
          %s770 = sld [smem:[#allocation15 + %s722]]
          %v771 = vstv %s770
          %v772 = vmul.f32 %v685, %v771
          %v773 = vadd.f32 %v769, %v772
          %s774 = sld [smem:[#allocation16 + %s727]]
          %v775 = vstv %s774
          %v776 = vadd.f32 %v773, %v775
          %s777 = sld [smem:[#allocation15 + %s731]]
          %v778 = vstv %s777
          %v779 = vmul.f32 %v681, %v778
          %s780 = sld [smem:[#allocation15 + %s735]]
          %v781 = vstv %s780
          %v782 = vmul.f32 %v683, %v781
          %v783 = vadd.f32 %v779, %v782
          %s784 = sld [smem:[#allocation15 + %s740]]
          %v785 = vstv %s784
          %v786 = vmul.f32 %v685, %v785
          %v787 = vadd.f32 %v783, %v786
          %s788 = sld [smem:[#allocation16 + %s745]]
          %v789 = vstv %s788
          %v790 = vadd.f32 %v787, %v789
          %s791 = sld [smem:[#allocation18 + %s695]]
          %v792 = vstv %s791
          %v793 = vmul.f32 %v681, %v792
          %s794 = sld [smem:[#allocation18 + %s699]]
          %v795 = vstv %s794
          %v796 = vmul.f32 %v683, %v795
          %v797 = vadd.f32 %v793, %v796
          %s798 = sld [smem:[#allocation18 + %s704]]
          %v799 = vstv %s798
          %v800 = vmul.f32 %v685, %v799
          %v801 = vadd.f32 %v797, %v800
          %s802 = sld [smem:[#allocation19 + %s709]]
          %v803 = vstv %s802
          %v804 = vadd.f32 %v801, %v803
          %s805 = sld [smem:[#allocation18 + %s713]]
          %v806 = vstv %s805
          %v807 = vmul.f32 %v681, %v806
          %s808 = sld [smem:[#allocation18 + %s717]]
          %v809 = vstv %s808
          %v810 = vmul.f32 %v683, %v809
          %v811 = vadd.f32 %v807, %v810
          %s812 = sld [smem:[#allocation18 + %s722]]
          %v813 = vstv %s812
          %v814 = vmul.f32 %v685, %v813
          %v815 = vadd.f32 %v811, %v814
          %s816 = sld [smem:[#allocation19 + %s727]]
          %v817 = vstv %s816
          %v818 = vadd.f32 %v815, %v817
          %s819 = sld [smem:[#allocation18 + %s731]]
          %v820 = vstv %s819
          %v821 = vmul.f32 %v681, %v820
          %s822 = sld [smem:[#allocation18 + %s735]]
          %v823 = vstv %s822
          %v824 = vmul.f32 %v683, %v823
          %v825 = vadd.f32 %v821, %v824
          %s826 = sld [smem:[#allocation18 + %s740]]
          %v827 = vstv %s826
          %v828 = vmul.f32 %v685, %v827
          %v829 = vadd.f32 %v825, %v828
          %s830 = sld [smem:[#allocation19 + %s745]]
          %v831 = vstv %s830
          %v832 = vadd.f32 %v829, %v831
          %v833 = vsub.f32 %v762, %v712
          %v834 = vmul.f32 %v833, %v833
          %v835 = vsub.f32 %v776, %v730
          %v836 = vmul.f32 %v835, %v835
          %v837 = vadd.f32 %v834, %v836
          %v838 = vsub.f32 %v790, %v748
          %v839 = vmul.f32 %v838, %v838
          %v840 = vadd.f32 %v837, %v839
          %v841 = vrsqrt.pop %v840
          %v842 = vmul.f32 %v841, %v840
          %v843 = vmul.f32 %v842, %v841
          %v844 = vmul.f32 0.5, %v843
          %v845 = vsub.f32 1.5, %v844
          %v846 = vmul.f32 %v841, %v845
          %v847 = vmul.f32 %v840, %v846
          %vm848 = vcmp.eq.f32.partialorder %v840, inf
          %v849 = vsel %vm848, %v840, %v847
          %vm850 = vcmp.eq.f32.partialorder %v840, 0.0
          %v851 = vand.u32 %v840, 2147483648
          %v852 = vsel %vm850, %v851, %v849
          %v853 = vsub.f32 %v804, %v712
          %v854 = vmul.f32 %v853, %v853
          %v855 = vsub.f32 %v818, %v730
          %v856 = vmul.f32 %v855, %v855
          %v857 = vadd.f32 %v854, %v856
          %v858 = vsub.f32 %v832, %v748
          %v859 = vmul.f32 %v858, %v858
          %v860 = vadd.f32 %v857, %v859
          %v861 = vrsqrt.pop %v860
          %v862 = vmul.f32 %v861, %v860
          %v863 = vmul.f32 %v862, %v861
          %v864 = vmul.f32 0.5, %v863
          %v865 = vsub.f32 1.5, %v864
          %v866 = vmul.f32 %v861, %v865
          %v867 = vmul.f32 %v860, %v866
          %vm868 = vcmp.eq.f32.partialorder %v860, inf
          %v869 = vsel %vm868, %v860, %v867
          %vm870 = vcmp.eq.f32.partialorder %v860, 0.0
          %v871 = vand.u32 %v860, 2147483648
          %v872 = vsel %vm870, %v871, %v869
          %v873 = vmul.f32 %v852, %v694
          %vm874 = vcmask 1040384
          %v875 = vsel %vm874, %v873, 0.0
          %876 = vadd.xlane.f32.xlu0 %v875
          %v877 = vpop.xlane.xlu0 %876
          %v878 = vrot.slane %v877, 4
          %v879 = vadd.f32 %v877, %v878
          %v880 = vrot.slane %v879, 2
          %v881 = vadd.f32 %v879, %v880
          %v882 = vrot.slane %v881, 1
          %v883 = vadd.f32 %v881, %v882
          %s884 = vtos %v883
          %s885 = smul.f32 %s884, 0.015625
          %v886 = vmul.f32 %v872, %v694
          %v887 = vsel %vm874, %v886, 0.0
          %888 = vadd.xlane.f32.xlu0 %v887
          %v889 = vpop.xlane.xlu0 %888
          %v890 = vrot.slane %v889, 4
          %v891 = vadd.f32 %v889, %v890
          %v892 = vrot.slane %v891, 2
          %v893 = vadd.f32 %v891, %v892
          %v894 = vrot.slane %v893, 1
          %v895 = vadd.f32 %v893, %v894
          %s896 = vtos %v895
          %s897 = smul.f32 %s896, 0.015625
          %vm898 = vcmp.eq.s32.totalorder %v687, 0
          %vm899 = vcmp.eq.s32.totalorder %v687, 1
          %v900 = vstv %s885
          %v901 = vstv %s897
          %v902 = vsel %vm899, %v900, %v901
          %v903 = vstv %s680
          %v904 = vsel %vm898, %v903, %v902
          %905 = vst [vmem:[%s596] sm:$0x7] %v904
        $region108: #{tpu_custom_call.1} parent=59 // pred_fallthru
          _
        %p906 = scmp.lt.s32.totalorder %s38, 1
        %s907 = scalar_select %p906, %s38, 1
        %s908 = smul.addr %s907, 4
        %s909 = scalar_lea.vmem %s10, %s908
        // Predicated region
        $region109: #{tpu_custom_call.1} parent=59 // pred_check
          %p910 = pneg %p300
        $region110: #{tpu_custom_call.1} parent=59 // pred_check_branch
          %912 = sbr.rel (%p910) target = $region112
        $region111: #{tpu_custom_call.1} parent=59 // pred_region
          _
        $region112: #{tpu_custom_call.1} parent=59 // pred_fallthru
          _
      $region60: #{tpu_custom_call.1} parent=5 // pred_fallthru
        _
      %p913 = scmp.le.s32.totalorder 2, %s29
      // Predicated region
      $region113: #{tpu_custom_call.1} parent=5 // pred_check
        %p914 = pneg %p913
      $region114: #{tpu_custom_call.1} parent=5 // pred_check_branch
        %916 = sbr.rel (%p914) target = $region116
      $region115: #{tpu_custom_call.1} parent=5 // pred_region
        %s917 = ssub.s32 %s29, 2
        // Predicated region
        $region117: #{tpu_custom_call.1} parent=115 // pred_check
          %p918 = pneg %p306
        $region118: #{tpu_custom_call.1} parent=115 // pred_check_branch
          %920 = sbr.rel (%p918) target = $region120
        $region119: #{tpu_custom_call.1} parent=115 // pred_region
          %p921 = scmp.lt.s32.totalorder %s40, 1
          %s922 = scalar_select %p921, %s40, 1
          %s923 = smul.addr %s922, 4
          %s924 = scalar_lea.vmem %s10, %s923
        $region120: #{tpu_custom_call.1} parent=115 // pred_fallthru
          _
      $region116: #{tpu_custom_call.1} parent=5 // pred_fallthru
        _
    $region6: #{tpu_custom_call.1} parent=1 // loop_footer
      %s33 = sadd.s32 1, %s29
    $region7: #{tpu_custom_call.1} parent=1 // loop_footer_branch
      %28 = sbr.rel target = $region3
    $region8: #{tpu_custom_call.1} parent=1 // loop_exit
      _
    %925 = vsyncpa [#allocation5], 1
    %s926 = scalar_lea.sflag [#allocation5], 1
    %927 = vsyncpa %s926, 1
    %928 = vsyncpa [#allocation8], 1
    %s929 = scalar_lea.sflag [#allocation8], 1
    %930 = vsyncpa %s929, 1
    %931 = vsyncpa [#allocation11], 1
    %s932 = scalar_lea.sflag [#allocation11], 1
    %933 = vsyncpa %s932, 1
    %934 = vsyncpa [#allocation6], 1
    %s935 = scalar_lea.sflag [#allocation6], 1
    %936 = vsyncpa %s935, 1
    %937 = vsyncpa [#allocation14], 1
    %938 = vsyncpa [#allocation17], 1
    %939 = vsyncpa [#allocation20], 1

</llo_original>
